<compile_context>
chip_gen: v5e
topology: v5e:2x2
jax: 0.10.0
libtpu: 0.0.40
codegen_flags: <defaults>
</compile_context>

<pallas_src>
import functools

import jax
import jax.numpy as jnp
import numpy as np
from jax.experimental import pallas as pl

# ----- small synthetic hyper-params (consistent with the module's __init__) -----
ATTR_NUM = 16      # args.attr_num
D = 32             # args.attr_present_dim
M = 32             # args.implicit_dim
K_IMG = 4096       # hard-coded image feature width in the module
B = 4              # batch
L = 8              # attributes per example
NEG_SLOPE = 0.01   # nn.LeakyReLU() default


# --------------------------------------------------------------------------
# Fused kernel: attribute attention (matmuls + LeakyReLU + batch-axis softmax
# + weighted reduction) AND the image projection, single invocation, all
# operands VMEM-resident.
# --------------------------------------------------------------------------
def _fused_kernel(attr_ref, w1t_ref, b1_ref, w2_ref, gsum_ref, bsum_ref,
                  img_ref, proj_ref, out_ref):
    # attr_ref : (B*L, D)   flattened attr_present, row i = (b, l) with i = b*L + l
    # w1t_ref  : (D, D)     == W1.T          b1_ref : (1, D)        w2_ref : (D, 1)
    # gsum_ref : (B*L, B*L) gsum[i, j] = 1. iff i % L == j % L   (sum over batch, same l)
    # bsum_ref : (B, B*L)   bsum[b, i] = 1. iff i // L == b      (sum over l, same batch)
    # img_ref  : (B, K_IMG) f32              proj_ref: (K_IMG, M) bf16
    # out_ref  : (B, D + M) == [ z_v | p_v ]
    attr = attr_ref[...]                                                   # (B*L, D)

    # ---- attribute attention -------------------------------------------------
    t = jnp.dot(attr, w1t_ref[...], preferred_element_type=jnp.float32) + b1_ref[...]
    t = jnp.where(t >= 0, t, NEG_SLOPE * t)                                # LeakyReLU
    s = jnp.dot(t, w2_ref[...], preferred_element_type=jnp.float32)        # (B*L, 1)

    # Softmax over the BATCH axis (torch Softmax(dim=0) on (B, L, 1) scores).
    # Shift by the global max (softmax is shift-invariant -> exact and stable);
    # per-(l) denominators via one tiny 0/1 matmul.
    m = jnp.max(s, axis=0, keepdims=True)                                   # (1, 1)
    e = jnp.exp(s - m)                                                      # (B*L, 1)
    denom = jnp.dot(gsum_ref[...], e, preferred_element_type=jnp.float32)   # (B*L, 1)
    attn = e / denom                                                        # (B*L, 1)

    # z_v[b, :] = sum_l attn[b*L + l] * attr[b*L + l, :]
    z = jnp.dot(bsum_ref[...], attn * attr,
                preferred_element_type=jnp.float32)                         # (B, D)

    # ---- image projection ------------------------------------------------------
    p = jnp.dot(img_ref[...], proj_ref[...].astype(jnp.float32),
                preferred_element_type=jnp.float32)                         # (B, M)

    # One lane-dense output slab: [ z | p ].
    out_ref[:, 0:D] = z
    out_ref[:, D:D + M] = p


# --------------------------------------------------------------------------
# Constant "group sum" matrices (tiny, computed once on host).
# --------------------------------------------------------------------------
def _make_group_mats():
    idx = np.arange(B * L)
    gsum = (idx[:, None] % L == idx[None, :] % L).astype(np.float32)              # (B*L, B*L)
    bsum = (np.arange(B)[:, None] == (idx[None, :] // L)).astype(np.float32)      # (B, B*L)
    return gsum, bsum


_GSUM_NP, _BSUM_NP = _make_group_mats()


# --------------------------------------------------------------------------
# Wrapper (glue: embedding gather, flattening, output split)
# --------------------------------------------------------------------------
def disen_vae_forward(params, attribute, image_feature, user_id=None):
    # user_id is accepted (as in the torch signature) but unused by forward().
    del user_id

    # Embedding lookup (glue; gather is not the hot path here).
    attr_present = jnp.take(params["attr_matrix"], attribute, axis=0)        # (B, L, D)
    attr_flat = attr_present.reshape(B * L, D)                               # free reshape, outside kernel

    out = pl.pallas_call(
        _fused_kernel,
        out_shape=jax.ShapeDtypeStruct((B, D + M), jnp.float32),
    )(attr_flat,
      params["attr_W1_T"],
      params["attr_b1"].reshape(1, D),
      params["attr_W2"],
      jnp.asarray(_GSUM_NP),
      jnp.asarray(_BSUM_NP),
      image_feature,
      params["image_projection"])

    z_v = out[:, :D]
    p_v = out[:, D:]
    return z_v, p_v


# --------------------------------------------------------------------------
# Deterministic parameter init (mirrors shapes from DisenVAE.__init__;
# xavier_normal_ where the torch code applies it).
# --------------------------------------------------------------------------
def init_params(key):
    k0, k1, k2, k3, k4 = jax.random.split(key, 5)

    def xavier(k, shape):
        fan_in, fan_out = shape[0], shape[1]
        std = np.sqrt(2.0 / (fan_in + fan_out)).astype(np.float32)
        return std * jax.random.normal(k, shape, jnp.float32)

    attr_matrix = jax.random.normal(k0, (ATTR_NUM + 1, D), jnp.float32)
    attr_matrix = attr_matrix.at[ATTR_NUM].set(0.0)       # padding_idx row zeroed

    return {
        "attr_matrix": attr_matrix,
        # Stored pre-transposed (forward only ever uses W1.T); xavier_normal of
        # a square matrix is distribution-invariant under transpose.
        "attr_W1_T": xavier(k1, (D, D)),
        # attr_b1 is never initialized by __init_param__ in torch (uninitialized
        # memory); we use a deterministic small normal instead.
        "attr_b1": 0.1 * jax.random.normal(k2, (D,), jnp.float32),
        "attr_W2": xavier(k3, (D, 1)),
        # bf16 storage halves the dominant HBM transfer; f32 accumulation in-kernel.
        "image_projection": xavier(k4, (K_IMG, M)).astype(jnp.bfloat16),
    }
    # TODO(synk): moe_gate / fc1-3 / mean & log_v encoders / decoders / gen_layers
    # are constructed in __init__ but never used by forward(); not implemented.


# --------------------------------------------------------------------------
# Pure numpy reference for verification
# --------------------------------------------------------------------------
def ref_forward(params, attribute, image_feature):
    emb = np.asarray(params["attr_matrix"], dtype=np.float64)
    w1t = np.asarray(params["attr_W1_T"], dtype=np.float64)
    b1 = np.asarray(params["attr_b1"], dtype=np.float64)
    w2 = np.asarray(params["attr_W2"], dtype=np.float64)
    proj = np.asarray(params["image_projection"].astype(jnp.float32), dtype=np.float64)
    attribute = np.asarray(attribute)
    img = np.asarray(image_feature, dtype=np.float64)

    attr_present = emb[attribute]                          # (B, L, D)
    t = attr_present @ w1t + b1
    t = np.where(t >= 0, t, NEG_SLOPE * t)
    s = t @ w2                                             # (B, L, 1)
    e = np.exp(s - s.max(axis=0, keepdims=True))
    attn = e / e.sum(axis=0, keepdims=True)                # softmax over dim=0 (batch)
    z_v = np.sum(attn * attr_present, axis=1)              # (B, D) == (attn^T @ attr).squeeze()
    p_v = img @ proj                                       # (B, M)
    return z_v, p_v


if __name__ == "__main__":
    key = jax.random.PRNGKey(0)
    kp, ka, ki = jax.random.split(key, 3)

    params = init_params(kp)
    attribute = jax.random.randint(ka, (B, L), 0, ATTR_NUM + 1).astype(jnp.int32)
    image_feature = jax.random.normal(ki, (B, K_IMG), jnp.float32)
    user_id = jnp.arange(B, dtype=jnp.int32)  # unused by forward (matches torch)

    fwd = jax.jit(functools.partial(disen_vae_forward, params))
    z_v, p_v = fwd(attribute, image_feature, user_id)
    jax.block_until_ready((z_v, p_v))

    z_ref, p_ref = ref_forward(params, attribute, image_feature)
    np.testing.assert_allclose(np.asarray(z_v), z_ref, rtol=1e-2, atol=1e-2)
    np.testing.assert_allclose(np.asarray(p_v), p_ref, rtol=1e-2, atol=1e-2)

    print("KERNEL_OK")
</pallas_src>

<mosaic_0001>
module attributes {stable_mosaic.version = 11 : i64} {
  func.func @_fused_kernel(%arg0: memref<32x32xf32, #tpu.memory_space<vmem>>, %arg1: memref<32x32xf32, #tpu.memory_space<vmem>>, %arg2: memref<1x32xf32, #tpu.memory_space<vmem>>, %arg3: memref<32x1xf32, #tpu.memory_space<vmem>>, %arg4: memref<32x32xf32, #tpu.memory_space<vmem>>, %arg5: memref<4x32xf32, #tpu.memory_space<vmem>>, %arg6: memref<4x4096xf32, #tpu.memory_space<vmem>>, %arg7: memref<4096x32xbf16, #tpu.memory_space<vmem>>, %arg8: memref<4x64xf32, #tpu.memory_space<vmem>>) attributes {dimension_semantics = [], scalar_prefetch = 0 : i64, scratch_operands = 0 : i64, tpu.core_type = #tpu.core_type<tc>} {
    %c0 = arith.constant 0 : index
    %c0_0 = arith.constant 0 : index
    %0 = vector.load %arg0[%c0, %c0_0] : memref<32x32xf32, #tpu.memory_space<vmem>>, vector<32x32xf32>
    %c0_1 = arith.constant 0 : index
    %c0_2 = arith.constant 0 : index
    %1 = vector.load %arg1[%c0_1, %c0_2] : memref<32x32xf32, #tpu.memory_space<vmem>>, vector<32x32xf32>
    %cst = arith.constant dense<0.000000e+00> : vector<32x32xf32>
    %2 = tpu.matmul %0, %1, %cst {dimension_numbers = #tpu.dot_dimension_numbers<[1], [0], [0], [1], [0, 0, 1, 1], [], []>} : vector<32x32xf32>, vector<32x32xf32>, vector<32x32xf32> -> vector<32x32xf32>
    %c0_3 = arith.constant 0 : index
    %c0_4 = arith.constant 0 : index
    %3 = vector.load %arg2[%c0_3, %c0_4] : memref<1x32xf32, #tpu.memory_space<vmem>>, vector<1x32xf32>
    %4 = vector.broadcast %3 : vector<1x32xf32> to vector<32x32xf32>
    %5 = arith.addf %2, %4 : vector<32x32xf32>
    %cst_5 = arith.constant 0.000000e+00 : f32
    %6 = vector.broadcast %cst_5 : f32 to vector<32x32xf32>
    %7 = arith.cmpf oge, %5, %6 : vector<32x32xf32>
    %cst_6 = arith.constant 0.00999999977 : f32
    %8 = vector.broadcast %cst_6 : f32 to vector<32x32xf32>
    %9 = arith.mulf %8, %5 : vector<32x32xf32>
    %10 = arith.select %7, %5, %9 : vector<32x32xi1>, vector<32x32xf32>
    %c0_7 = arith.constant 0 : index
    %c0_8 = arith.constant 0 : index
    %11 = vector.load %arg3[%c0_7, %c0_8] : memref<32x1xf32, #tpu.memory_space<vmem>>, vector<32x1xf32>
    %cst_9 = arith.constant dense<0.000000e+00> : vector<32x1xf32>
    %12 = tpu.matmul %10, %11, %cst_9 {dimension_numbers = #tpu.dot_dimension_numbers<[1], [0], [0], [1], [0, 0, 1, 1], [], []>} : vector<32x32xf32>, vector<32x1xf32>, vector<32x1xf32> -> vector<32x1xf32>
    %cst_10 = arith.constant dense<0xFF800000> : vector<1xf32>
    %13 = vector.multi_reduction <maximumf>, %12, %cst_10 [0] : vector<32x1xf32> to vector<1xf32>
    %14 = vector.shape_cast %13 : vector<1xf32> to vector<1x1xf32>
    %15 = vector.broadcast %14 : vector<1x1xf32> to vector<32x1xf32>
    %16 = arith.subf %12, %15 : vector<32x1xf32>
    %17 = math.exp %16 : vector<32x1xf32>
    %c0_11 = arith.constant 0 : index
    %c0_12 = arith.constant 0 : index
    %18 = vector.load %arg4[%c0_11, %c0_12] : memref<32x32xf32, #tpu.memory_space<vmem>>, vector<32x32xf32>
    %cst_13 = arith.constant dense<0.000000e+00> : vector<32x1xf32>
    %19 = tpu.matmul %18, %17, %cst_13 {dimension_numbers = #tpu.dot_dimension_numbers<[1], [0], [0], [1], [0, 0, 1, 1], [], []>} : vector<32x32xf32>, vector<32x1xf32>, vector<32x1xf32> -> vector<32x1xf32>
    %20 = arith.divf %17, %19 : vector<32x1xf32>
    %c0_14 = arith.constant 0 : index
    %c0_15 = arith.constant 0 : index
    %21 = vector.load %arg5[%c0_14, %c0_15] : memref<4x32xf32, #tpu.memory_space<vmem>>, vector<4x32xf32>
    %22 = vector.broadcast %20 : vector<32x1xf32> to vector<32x32xf32>
    %23 = arith.mulf %22, %0 : vector<32x32xf32>
    %cst_16 = arith.constant dense<0.000000e+00> : vector<4x32xf32>
    %24 = tpu.matmul %21, %23, %cst_16 {dimension_numbers = #tpu.dot_dimension_numbers<[1], [0], [0], [1], [0, 0, 1, 1], [], []>} : vector<4x32xf32>, vector<32x32xf32>, vector<4x32xf32> -> vector<4x32xf32>
    %c0_17 = arith.constant 0 : index
    %c0_18 = arith.constant 0 : index
    %25 = vector.load %arg6[%c0_17, %c0_18] : memref<4x4096xf32, #tpu.memory_space<vmem>>, vector<4x4096xf32>
    %c0_19 = arith.constant 0 : index
    %c0_20 = arith.constant 0 : index
    %26 = vector.load %arg7[%c0_19, %c0_20] : memref<4096x32xbf16, #tpu.memory_space<vmem>>, vector<4096x32xbf16>
    %27 = arith.extf %26 : vector<4096x32xbf16> to vector<4096x32xf32>
    %cst_21 = arith.constant dense<0.000000e+00> : vector<4x32xf32>
    %28 = tpu.matmul %25, %27, %cst_21 {dimension_numbers = #tpu.dot_dimension_numbers<[1], [0], [0], [1], [0, 0, 1, 1], [], []>} : vector<4x4096xf32>, vector<4096x32xf32>, vector<4x32xf32> -> vector<4x32xf32>
    %c0_22 = arith.constant 0 : index
    %c0_23 = arith.constant 0 : index
    %29 = vector.load %arg8[%c0_22, %c0_23] : memref<4x64xf32, #tpu.memory_space<vmem>>, vector<4x32xf32>
    tpu.vector_store %arg8[%c0_22, %c0_23], %24 {strides = array<i32>} : memref<4x64xf32, #tpu.memory_space<vmem>>, vector<4x32xf32>,
    %c0_24 = arith.constant 0 : index
    %c32 = arith.constant 32 : index
    %30 = vector.load %arg8[%c0_24, %c32] : memref<4x64xf32, #tpu.memory_space<vmem>>, vector<4x32xf32>
    tpu.vector_store %arg8[%c0_24, %c32], %28 {strides = array<i32>} : memref<4x64xf32, #tpu.memory_space<vmem>>, vector<4x32xf32>,
    return
  }
}

</mosaic_0001>

<llo_original>
// kernel: disen_vae_forward.1
$region0: #{disen_vae_forward.1}
  #allocation0 [shape = 'u32[]', space=smem, size = 0x4, offset = 0x4, fixed_abs, tag = 'smem constant byte address 0x4 - core index']
  #allocation1 [shape = 'u32[72,128]{1,0:T(1,128)}', space=vmem, size = 0x9000, scoped, tag = 'internal scratch']
  %s0 = inlined_call_operand.vmem [shape: f32[32,32], index: 0, kind: input, shape index: {}]
  %s1 = inlined_call_operand.vmem [shape: f32[32,32], index: 1, kind: input, shape index: {}]
  %s2 = inlined_call_operand.vmem [shape: f32[1,32], index: 2, kind: input, shape index: {}]
  %s3 = inlined_call_operand.vmem [shape: f32[32,1], index: 3, kind: input, shape index: {}]
  %s4 = inlined_call_operand.vmem [shape: f32[32,32], index: 4, kind: input, shape index: {}]
  %s5 = inlined_call_operand.vmem [shape: f32[4,32], index: 5, kind: input, shape index: {}]
  %s6 = inlined_call_operand.vmem [shape: f32[4,4096], index: 6, kind: input, shape index: {}]
  %s7 = inlined_call_operand.hbm [shape: bf16[4096,32], index: 7, kind: input, shape index: {}]
  %s8 = inlined_call_operand.vmem [shape: f32[4,64], index: 8, kind: output, shape index: {}]
  %s9 = sld [smem:[#allocation0]]
  $region46: #{disen_vae_forward.1} parent=0
    _
  %s11 = ssub.s32 1, %s9
  %s12 = scalar_select 0, %s11, %s9
  $region1: #{disen_vae_forward.1} parent=0
    #allocation2 [shape = 'u8[1048576]{0}', space=vmem, size = 0x100000, scoped, tag = 'input window, operand 7, single buffered']
    #allocation3 [shape = 's32[1]{0}', space=sflag, size = 0x4, scoped, tag = 'scoped memory for disen_vae_forward.1']
    %13 = vsyncpa [#allocation3], 0
    // Predicated region
    $region2: #{disen_vae_forward.1} parent=1 // pred_check
      _
    $region3: #{disen_vae_forward.1} parent=1 // pred_check_branch
      %15 = sbr.rel (0) target = $region5
    $region4: #{disen_vae_forward.1} parent=1 // pred_region
      _
    $region5: #{disen_vae_forward.1} parent=1 // pred_fallthru
      _
    // Predicated region
    $region6: #{disen_vae_forward.1} parent=1 // pred_check
      _
    $region7: #{disen_vae_forward.1} parent=1 // pred_check_branch
      %17 = sbr.rel (0) target = $region9
    $region8: #{disen_vae_forward.1} parent=1 // pred_region
      _
    $region9: #{disen_vae_forward.1} parent=1 // pred_fallthru
      _
    // Predicated region
    $region10: #{disen_vae_forward.1} parent=1 // pred_check
      _
    $region11: #{disen_vae_forward.1} parent=1 // pred_check_branch
      %19 = sbr.rel (0) target = $region13
    $region12: #{disen_vae_forward.1} parent=1 // pred_region
      _
    $region13: #{disen_vae_forward.1} parent=1 // pred_fallthru
      _
    // Predicated region
    $region14: #{disen_vae_forward.1} parent=1 // pred_check
      _
    $region15: #{disen_vae_forward.1} parent=1 // pred_check_branch
      %21 = sbr.rel (0) target = $region17
    $region16: #{disen_vae_forward.1} parent=1 // pred_region
      _
    $region17: #{disen_vae_forward.1} parent=1 // pred_fallthru
      _
    // Predicated region
    $region18: #{disen_vae_forward.1} parent=1 // pred_check
      _
    $region19: #{disen_vae_forward.1} parent=1 // pred_check_branch
      %23 = sbr.rel (0) target = $region21
    $region20: #{disen_vae_forward.1} parent=1 // pred_region
      _
    $region21: #{disen_vae_forward.1} parent=1 // pred_fallthru
      _
    // Predicated region
    $region22: #{disen_vae_forward.1} parent=1 // pred_check
      _
    $region23: #{disen_vae_forward.1} parent=1 // pred_check_branch
      %25 = sbr.rel (0) target = $region25
    $region24: #{disen_vae_forward.1} parent=1 // pred_region
      _
    $region25: #{disen_vae_forward.1} parent=1 // pred_fallthru
      _
    // Predicated region
    $region26: #{disen_vae_forward.1} parent=1 // pred_check
      _
    $region27: #{disen_vae_forward.1} parent=1 // pred_check_branch
      %27 = sbr.rel (0) target = $region29
    $region28: #{disen_vae_forward.1} parent=1 // pred_region
      _
    $region29: #{disen_vae_forward.1} parent=1 // pred_fallthru
      _
    // Predicated region
    $region30: #{disen_vae_forward.1} parent=1 // pred_check
      _
    $region31: #{disen_vae_forward.1} parent=1 // pred_check_branch
      %29 = sbr.rel (0) target = $region33
    $region32: #{disen_vae_forward.1} parent=1 // pred_region
      %31 = vsyncadd [#allocation3], 0
      %s32 = sshll.u32 %s7, 4
      %s33 = int_to_ptr.hbm [resolvable:$true] %s32
      %s34 = sshll.u32 [#allocation2], 4
      %s35 = int_to_ptr.vmem [resolvable:$true] %s34
      %40 = dma.hbm_to_vmem [thread:$0]  %s33, 32768, %s35, [#allocation3], 64, 64, 4
    $region33: #{disen_vae_forward.1} parent=1 // pred_fallthru
      _
    // Predicated region
    $region34: #{disen_vae_forward.1} parent=1 // pred_check
      _
    $region35: #{disen_vae_forward.1} parent=1 // pred_check_branch
      %42 = sbr.rel (0) target = $region37
    $region36: #{disen_vae_forward.1} parent=1 // pred_region
      %44 = dma.done [#allocation3], 32768
    $region37: #{disen_vae_forward.1} parent=1 // pred_fallthru
      _
    %v45 = vld [vmem:[%s0] sm:$0xff]
    %v46 = vld [vmem:[%s0 + $0x8] sm:$0xff]
    %v47 = vld [vmem:[%s0 + $0x10] sm:$0xff]
    %v48 = vld [vmem:[%s0 + $0x18] sm:$0xff]
    %v49 = vld [vmem:[%s1] sm:$0xff]
    %v50 = vld [vmem:[%s1 + $0x8] sm:$0xff]
    %v51 = vld [vmem:[%s1 + $0x10] sm:$0xff]
    %v52 = vld [vmem:[%s1 + $0x18] sm:$0xff]
    %v53 = vld [vmem:[%s2] sm:$0x1]
    %v55 = vperm.slane %v53, 0
    %vm57 = vcmask 261120
    %v59 = vsel %vm57, %v45, 0
    %v62 = vsel %vm57, %v46, 0
    %v65 = vsel %vm57, %v47, 0
    %v68 = vsel %vm57, %v48, 0
    %70 = vmatpush.msra.mxu0 0.0
    %71 = vmatpush.msra.mxu0 0.0
    %72 = vmatpush.msra.mxu0 0.0
    %73 = vmatpush.msra.mxu0 0.0
    %74 = vmatpush.msra.mxu0 0.0
    %75 = vmatpush.msra.mxu0 0.0
    %76 = vmatpush.msra.mxu0 0.0
    %77 = vmatpush.msra.mxu0 0.0
    %78 = vmatpush.msra.mxu0 0.0
    %79 = vmatpush.msra.mxu0 0.0
    %80 = vmatpush.msra.mxu0 0.0
    %81 = vmatpush.msra.mxu0 0.0
    %82 = vmatpush.msra.mxu0 %v52
    %83 = vmatpush.msra.mxu0 %v51
    %84 = vmatpush.msra.mxu0 %v50
    %85 = vmatpush.msra.mxu0 %v49
    %86 = vmatmul.f32.gmra.mxu0 %v59
    %v87 = vpop.f32.mrf.mxu0
    %v88 = vadd.f32 %v55, %v87
    %89 = vmatmul.f32.gmra.mxu0 %v62
    %v90 = vpop.f32.mrf.mxu0
    %v91 = vadd.f32 %v55, %v90
    %92 = vmatmul.f32.gmra.mxu0 %v65
    %v93 = vpop.f32.mrf.mxu0
    %v94 = vadd.f32 %v55, %v93
    %95 = vmatmul.f32.gmra.mxu0 %v68
    %v96 = vpop.f32.mrf.mxu0
    %v97 = vadd.f32 %v55, %v96
    %98 = vdwg.mxu0
    %vm99 = vcmp.ge.f32.partialorder %v88, 0.0
    %vm100 = vcmp.ge.f32.partialorder %v91, 0.0
    %vm101 = vcmp.ge.f32.partialorder %v94, 0.0
    %vm102 = vcmp.ge.f32.partialorder %v97, 0.0
    %v103 = vmul.f32 %v88, 0.01
    %v104 = vmul.f32 %v91, 0.01
    %v105 = vmul.f32 %v94, 0.01
    %v106 = vmul.f32 %v97, 0.01
    %v107 = vsel %vm99, %v88, %v103
    %v108 = vsel %vm100, %v91, %v104
    %v109 = vsel %vm101, %v94, %v105
    %v110 = vsel %vm102, %v97, %v106
    %v111 = vld [vmem:[%s3] sm:$0xff]
    %v112 = vld [vmem:[%s3 + $0x8] sm:$0xff]
    %v113 = vld [vmem:[%s3 + $0x10] sm:$0xff]
    %v114 = vld [vmem:[%s3 + $0x18] sm:$0xff]
    %v116 = vsel %vm57, %v107, 0
    %v119 = vsel %vm57, %v108, 0
    %v122 = vsel %vm57, %v109, 0
    %v125 = vsel %vm57, %v110, 0
    %127 = vmatpush.msra.mxu0 0.0
    %128 = vmatpush.msra.mxu0 0.0
    %129 = vmatpush.msra.mxu0 0.0
    %130 = vmatpush.msra.mxu0 0.0
    %131 = vmatpush.msra.mxu0 0.0
    %132 = vmatpush.msra.mxu0 0.0
    %133 = vmatpush.msra.mxu0 0.0
    %134 = vmatpush.msra.mxu0 0.0
    %135 = vmatpush.msra.mxu0 0.0
    %136 = vmatpush.msra.mxu0 0.0
    %137 = vmatpush.msra.mxu0 0.0
    %138 = vmatpush.msra.mxu0 0.0
    %139 = vmatpush.msra.mxu0 %v114
    %140 = vmatpush.msra.mxu0 %v113
    %141 = vmatpush.msra.mxu0 %v112
    %142 = vmatpush.msra.mxu0 %v111
    %143 = vmatmul.f32.gmra.mxu0 %v116
    %v144 = vpop.f32.mrf.mxu0
    %v145 = vadd.f32 0.0, %v144
    %146 = vmatmul.f32.gmra.mxu0 %v119
    %v147 = vpop.f32.mrf.mxu0
    %v148 = vadd.f32 0.0, %v147
    %149 = vmatmul.f32.gmra.mxu0 %v122
    %v150 = vpop.f32.mrf.mxu0
    %v151 = vadd.f32 0.0, %v150
    %152 = vmatmul.f32.gmra.mxu0 %v125
    %v153 = vpop.f32.mrf.mxu0
    %v154 = vadd.f32 0.0, %v153
    %155 = vdwg.mxu0
    %vm156 = vcmask 7168
    %v157 = vsel %vm156, %v145, -inf
    %v158 = vsel %vm156, %v148, -inf
    %v159 = vsel %vm156, %v151, -inf
    %v160 = vsel %vm156, %v154, -inf
    %v161 = vmax.f32 %v157, %v158
    %v162 = vmax.f32 %v159, %v160
    %v163 = vmax.f32 %v161, %v162
    %v164 = vrot.slane %v163, 4
    %v165 = vmax.f32 %v163, %v164
    %v166 = vrot.slane %v165, 2
    %v167 = vmax.f32 %v165, %v166
    %v168 = vrot.slane %v167, 1
    %v169 = vmax.f32 %v167, %v168
    %v170 = vsub.f32 %v145, %v169
    %v171 = vsub.f32 %v148, %v169
    %v172 = vsub.f32 %v151, %v169
    %v173 = vsub.f32 %v154, %v169
    %v174 = vmul.f32 %v170, 1.442695
    %v175 = vpow.pop %v174
    %v176 = vmul.f32 %v171, 1.442695
    %v177 = vpow.pop %v176
    %v178 = vmul.f32 %v172, 1.442695
    %v179 = vpow.pop %v178
    %v180 = vmul.f32 %v173, 1.442695
    %v181 = vpow.pop %v180
    %v182 = vld [vmem:[%s4] sm:$0xff]
    %v183 = vld [vmem:[%s4 + $0x8] sm:$0xff]
    %v184 = vld [vmem:[%s4 + $0x10] sm:$0xff]
    %v185 = vld [vmem:[%s4 + $0x18] sm:$0xff]
    %v187 = vsel %vm57, %v182, 0
    %v190 = vsel %vm57, %v183, 0
    %v193 = vsel %vm57, %v184, 0
    %v196 = vsel %vm57, %v185, 0
    %198 = vmatpush.msra.mxu0 0.0
    %199 = vmatpush.msra.mxu0 0.0
    %200 = vmatpush.msra.mxu0 0.0
    %201 = vmatpush.msra.mxu0 0.0
    %202 = vmatpush.msra.mxu0 0.0
    %203 = vmatpush.msra.mxu0 0.0
    %204 = vmatpush.msra.mxu0 0.0
    %205 = vmatpush.msra.mxu0 0.0
    %206 = vmatpush.msra.mxu0 0.0
    %207 = vmatpush.msra.mxu0 0.0
    %208 = vmatpush.msra.mxu0 0.0
    %209 = vmatpush.msra.mxu0 0.0
    %210 = vmatpush.msra.mxu0 %v181
    %211 = vmatpush.msra.mxu0 %v179
    %212 = vmatpush.msra.mxu0 %v177
    %213 = vmatpush.msra.mxu0 %v175
    %214 = vmatmul.f32.gmra.mxu0 %v187
    %v215 = vpop.f32.mrf.mxu0
    %v216 = vadd.f32 0.0, %v215
    %217 = vmatmul.f32.gmra.mxu0 %v190
    %v218 = vpop.f32.mrf.mxu0
    %v219 = vadd.f32 0.0, %v218
    %220 = vmatmul.f32.gmra.mxu0 %v193
    %v221 = vpop.f32.mrf.mxu0
    %v222 = vadd.f32 0.0, %v221
    %223 = vmatmul.f32.gmra.mxu0 %v196
    %v224 = vpop.f32.mrf.mxu0
    %v225 = vadd.f32 0.0, %v224
    %226 = vdwg.mxu0
    %v227 = vrcp.pop %v216
    %v228 = vmul.f32 %v216, %v227
    %v229 = vsub.f32 1.0, %v228
    %v230 = vmul.f32 %v227, %v229
    %v231 = vadd.f32 %v227, %v230
    %vm232 = vweird.f32 %v216
    %vm233 = vweird.f32 %v227
    %vm234 = vmor %vm232, %vm233
    %v235 = vsel %vm234, %v227, %v231
    %v236 = vand.u32 2147483647, %v216
    %vm237 = vcmp.eq.f32.partialorder %v236, 8.507059e+37
    %v238 = vand.u32 %v216, 2147483648
    %v239 = vor.u32 1.1754944e-38, %v238
    %v240 = vsel %vm237, %v239, %v235
    %v241 = vmul.f32 %v175, %v240
    %v242 = vrcp.pop %v219
    %v243 = vmul.f32 %v219, %v242
    %v244 = vsub.f32 1.0, %v243
    %v245 = vmul.f32 %v242, %v244
    %v246 = vadd.f32 %v242, %v245
    %vm247 = vweird.f32 %v219
    %vm248 = vweird.f32 %v242
    %vm249 = vmor %vm247, %vm248
    %v250 = vsel %vm249, %v242, %v246
    %v251 = vand.u32 2147483647, %v219
    %vm252 = vcmp.eq.f32.partialorder %v251, 8.507059e+37
    %v253 = vand.u32 %v219, 2147483648
    %v254 = vor.u32 1.1754944e-38, %v253
    %v255 = vsel %vm252, %v254, %v250
    %v256 = vmul.f32 %v177, %v255
    %v257 = vrcp.pop %v222
    %v258 = vmul.f32 %v222, %v257
    %v259 = vsub.f32 1.0, %v258
    %v260 = vmul.f32 %v257, %v259
    %v261 = vadd.f32 %v257, %v260
    %vm262 = vweird.f32 %v222
    %vm263 = vweird.f32 %v257
    %vm264 = vmor %vm262, %vm263
    %v265 = vsel %vm264, %v257, %v261
    %v266 = vand.u32 2147483647, %v222
    %vm267 = vcmp.eq.f32.partialorder %v266, 8.507059e+37
    %v268 = vand.u32 %v222, 2147483648
    %v269 = vor.u32 1.1754944e-38, %v268
    %v270 = vsel %vm267, %v269, %v265
    %v271 = vmul.f32 %v179, %v270
    %v272 = vrcp.pop %v225
    %v273 = vmul.f32 %v225, %v272
    %v274 = vsub.f32 1.0, %v273
    %v275 = vmul.f32 %v272, %v274
    %v276 = vadd.f32 %v272, %v275
    %vm277 = vweird.f32 %v225
    %vm278 = vweird.f32 %v272
    %vm279 = vmor %vm277, %vm278
    %v280 = vsel %vm279, %v272, %v276
    %v281 = vand.u32 2147483647, %v225
    %vm282 = vcmp.eq.f32.partialorder %v281, 8.507059e+37
    %v283 = vand.u32 %v225, 2147483648
    %v284 = vor.u32 1.1754944e-38, %v283
    %v285 = vsel %vm282, %v284, %v280
    %v286 = vmul.f32 %v181, %v285
    %v287 = vld [vmem:[%s5] sm:$0xf]
    %289 = vset.pattern.permute.xlu0 0
    %290 = vperm.xlu0 %289, %v241
    %v291 = vpop.permute.xlu0 %290
    %294 = vset.pattern.permute.xlu0 0
    %295 = vperm.xlu0 %294, %v256
    %v296 = vpop.permute.xlu0 %295
    %299 = vset.pattern.permute.xlu0 0
    %300 = vperm.xlu0 %299, %v271
    %v301 = vpop.permute.xlu0 %300
    %304 = vset.pattern.permute.xlu0 0
    %305 = vperm.xlu0 %304, %v286
    %v306 = vpop.permute.xlu0 %305
    %v308 = vmul.f32 %v291, %v45
    %v309 = vmul.f32 %v296, %v46
    %v310 = vmul.f32 %v301, %v47
    %v311 = vmul.f32 %v306, %v48
    %v313 = vsel %vm57, %v287, 0
    %315 = vmatpush.msra.mxu0 0.0
    %316 = vmatpush.msra.mxu0 0.0
    %317 = vmatpush.msra.mxu0 0.0
    %318 = vmatpush.msra.mxu0 0.0
    %319 = vmatpush.msra.mxu0 0.0
    %320 = vmatpush.msra.mxu0 0.0
    %321 = vmatpush.msra.mxu0 0.0
    %322 = vmatpush.msra.mxu0 0.0
    %323 = vmatpush.msra.mxu0 0.0
    %324 = vmatpush.msra.mxu0 0.0
    %325 = vmatpush.msra.mxu0 0.0
    %326 = vmatpush.msra.mxu0 0.0
    %327 = vmatpush.msra.mxu0 %v311
    %328 = vmatpush.msra.mxu0 %v310
    %329 = vmatpush.msra.mxu0 %v309
    %330 = vmatpush.msra.mxu0 %v308
    %331 = vmatmul.f32.gmra.mxu0 %v313
    %v332 = vpop.f32.mrf.mxu0
    %v333 = vadd.f32 0.0, %v332
    %334 = vdwg.mxu0
    %v335 = vld [vmem:[%s6] sm:$0xff]
    %v336 = vld [vmem:[%s6 + $0x8] sm:$0xff]
    %v337 = vld [vmem:[%s6 + $0x10] sm:$0xff]
    %v338 = vld [vmem:[%s6 + $0x18] sm:$0xff]
    %v339 = vld [vmem:[%s6 + $0x20] sm:$0xff]
    %v340 = vld [vmem:[%s6 + $0x28] sm:$0xff]
    %v341 = vld [vmem:[%s6 + $0x30] sm:$0xff]
    %v342 = vld [vmem:[%s6 + $0x38] sm:$0xff]
    %v343 = vld [vmem:[%s6 + $0x40] sm:$0xff]
    %v344 = vld [vmem:[%s6 + $0x48] sm:$0xff]
    %v345 = vld [vmem:[%s6 + $0x50] sm:$0xff]
    %v346 = vld [vmem:[%s6 + $0x58] sm:$0xff]
    %v347 = vld [vmem:[%s6 + $0x60] sm:$0xff]
    %v348 = vld [vmem:[%s6 + $0x68] sm:$0xff]
    %v349 = vld [vmem:[%s6 + $0x70] sm:$0xff]
    %v350 = vld [vmem:[%s6 + $0x78] sm:$0xff]
    %v351 = vld [vmem:[#allocation2] sm:$0xf]
    %v352 = vld [vmem:[#allocation2 + $0x4] sm:$0xf]
    %v353 = vld [vmem:[#allocation2 + $0x8] sm:$0xf]
    %v354 = vld [vmem:[#allocation2 + $0xc] sm:$0xf]
    %v355 = vld [vmem:[#allocation2 + $0x10] sm:$0xf]
    %v356 = vld [vmem:[#allocation2 + $0x14] sm:$0xf]
    %v357 = vld [vmem:[#allocation2 + $0x18] sm:$0xf]
    %v358 = vld [vmem:[#allocation2 + $0x1c] sm:$0xf]
    %v359 = vld [vmem:[#allocation2 + $0x20] sm:$0xf]
    %v360 = vld [vmem:[#allocation2 + $0x24] sm:$0xf]
    %v361 = vld [vmem:[#allocation2 + $0x28] sm:$0xf]
    %v362 = vld [vmem:[#allocation2 + $0x2c] sm:$0xf]
    %v363 = vld [vmem:[#allocation2 + $0x30] sm:$0xf]
    %v364 = vld [vmem:[#allocation2 + $0x34] sm:$0xf]
    %v365 = vld [vmem:[#allocation2 + $0x38] sm:$0xf]
    %v366 = vld [vmem:[#allocation2 + $0x3c] sm:$0xf]
    %v367 = vld [vmem:[#allocation2 + $0x40] sm:$0xf]
    %v368 = vld [vmem:[#allocation2 + $0x44] sm:$0xf]
    %v369 = vld [vmem:[#allocation2 + $0x48] sm:$0xf]
    %v370 = vld [vmem:[#allocation2 + $0x4c] sm:$0xf]
    %v371 = vld [vmem:[#allocation2 + $0x50] sm:$0xf]
    %v372 = vld [vmem:[#allocation2 + $0x54] sm:$0xf]
    %v373 = vld [vmem:[#allocation2 + $0x58] sm:$0xf]
    %v374 = vld [vmem:[#allocation2 + $0x5c] sm:$0xf]
    %v375 = vld [vmem:[#allocation2 + $0x60] sm:$0xf]
    %v376 = vld [vmem:[#allocation2 + $0x64] sm:$0xf]
    %v377 = vld [vmem:[#allocation2 + $0x68] sm:$0xf]
    %v378 = vld [vmem:[#allocation2 + $0x6c] sm:$0xf]
    %v379 = vld [vmem:[#allocation2 + $0x70] sm:$0xf]
    %v380 = vld [vmem:[#allocation2 + $0x74] sm:$0xf]
    %v381 = vld [vmem:[#allocation2 + $0x78] sm:$0xf]
    %v382 = vld [vmem:[#allocation2 + $0x7c] sm:$0xf]
    %v383 = vld [vmem:[#allocation2 + $0x80] sm:$0xf]
    %v384 = vld [vmem:[#allocation2 + $0x84] sm:$0xf]
    %v385 = vld [vmem:[#allocation2 + $0x88] sm:$0xf]
    %v386 = vld [vmem:[#allocation2 + $0x8c] sm:$0xf]
    %v387 = vld [vmem:[#allocation2 + $0x90] sm:$0xf]
    %v388 = vld [vmem:[#allocation2 + $0x94] sm:$0xf]
    %v389 = vld [vmem:[#allocation2 + $0x98] sm:$0xf]
    %v390 = vld [vmem:[#allocation2 + $0x9c] sm:$0xf]
    %v391 = vld [vmem:[#allocation2 + $0xa0] sm:$0xf]
    %v392 = vld [vmem:[#allocation2 + $0xa4] sm:$0xf]
    %v393 = vld [vmem:[#allocation2 + $0xa8] sm:$0xf]
    %v394 = vld [vmem:[#allocation2 + $0xac] sm:$0xf]
    %v395 = vld [vmem:[#allocation2 + $0xb0] sm:$0xf]
    %v396 = vld [vmem:[#allocation2 + $0xb4] sm:$0xf]
    %v397 = vld [vmem:[#allocation2 + $0xb8] sm:$0xf]
    %v398 = vld [vmem:[#allocation2 + $0xbc] sm:$0xf]
    %v399 = vld [vmem:[#allocation2 + $0xc0] sm:$0xf]
    %v400 = vld [vmem:[#allocation2 + $0xc4] sm:$0xf]
    %v401 = vld [vmem:[#allocation2 + $0xc8] sm:$0xf]
    %v402 = vld [vmem:[#allocation2 + $0xcc] sm:$0xf]
    %v403 = vld [vmem:[#allocation2 + $0xd0] sm:$0xf]
    %v404 = vld [vmem:[#allocation2 + $0xd4] sm:$0xf]
    %v405 = vld [vmem:[#allocation2 + $0xd8] sm:$0xf]
    %v406 = vld [vmem:[#allocation2 + $0xdc] sm:$0xf]
    %v407 = vld [vmem:[#allocation2 + $0xe0] sm:$0xf]
    %v408 = vld [vmem:[#allocation2 + $0xe4] sm:$0xf]
    %v409 = vld [vmem:[#allocation2 + $0xe8] sm:$0xf]
    %v410 = vld [vmem:[#allocation2 + $0xec] sm:$0xf]
    %v411 = vld [vmem:[#allocation2 + $0xf0] sm:$0xf]
    %v412 = vld [vmem:[#allocation2 + $0xf4] sm:$0xf]
    %v413 = vld [vmem:[#allocation2 + $0xf8] sm:$0xf]
    %v414 = vld [vmem:[#allocation2 + $0xfc] sm:$0xf]
    %v415 = vld [vmem:[#allocation2 + $0x100] sm:$0xf]
    %v416 = vld [vmem:[#allocation2 + $0x104] sm:$0xf]
    %v417 = vld [vmem:[#allocation2 + $0x108] sm:$0xf]
    %v418 = vld [vmem:[#allocation2 + $0x10c] sm:$0xf]
    %v419 = vld [vmem:[#allocation2 + $0x110] sm:$0xf]
    %v420 = vld [vmem:[#allocation2 + $0x114] sm:$0xf]
    %v421 = vld [vmem:[#allocation2 + $0x118] sm:$0xf]
    %v422 = vld [vmem:[#allocation2 + $0x11c] sm:$0xf]
    %v423 = vld [vmem:[#allocation2 + $0x120] sm:$0xf]
    %v424 = vld [vmem:[#allocation2 + $0x124] sm:$0xf]
    %v425 = vld [vmem:[#allocation2 + $0x128] sm:$0xf]
    %v426 = vld [vmem:[#allocation2 + $0x12c] sm:$0xf]
    %v427 = vld [vmem:[#allocation2 + $0x130] sm:$0xf]
    %v428 = vld [vmem:[#allocation2 + $0x134] sm:$0xf]
    %v429 = vld [vmem:[#allocation2 + $0x138] sm:$0xf]
    %v430 = vld [vmem:[#allocation2 + $0x13c] sm:$0xf]
    %v431 = vld [vmem:[#allocation2 + $0x140] sm:$0xf]
    %v432 = vld [vmem:[#allocation2 + $0x144] sm:$0xf]
    %v433 = vld [vmem:[#allocation2 + $0x148] sm:$0xf]
    %v434 = vld [vmem:[#allocation2 + $0x14c] sm:$0xf]
    %v435 = vld [vmem:[#allocation2 + $0x150] sm:$0xf]
    %v436 = vld [vmem:[#allocation2 + $0x154] sm:$0xf]
    %v437 = vld [vmem:[#allocation2 + $0x158] sm:$0xf]
    %v438 = vld [vmem:[#allocation2 + $0x15c] sm:$0xf]
    %v439 = vld [vmem:[#allocation2 + $0x160] sm:$0xf]
    %v440 = vld [vmem:[#allocation2 + $0x164] sm:$0xf]
    %v441 = vld [vmem:[#allocation2 + $0x168] sm:$0xf]
    %v442 = vld [vmem:[#allocation2 + $0x16c] sm:$0xf]
    %v443 = vld [vmem:[#allocation2 + $0x170] sm:$0xf]
    %v444 = vld [vmem:[#allocation2 + $0x174] sm:$0xf]
    %v445 = vld [vmem:[#allocation2 + $0x178] sm:$0xf]
    %v446 = vld [vmem:[#allocation2 + $0x17c] sm:$0xf]
    %v447 = vld [vmem:[#allocation2 + $0x180] sm:$0xf]
    %v448 = vld [vmem:[#allocation2 + $0x184] sm:$0xf]
    %v449 = vld [vmem:[#allocation2 + $0x188] sm:$0xf]
    %v450 = vld [vmem:[#allocation2 + $0x18c] sm:$0xf]
    %v451 = vld [vmem:[#allocation2 + $0x190] sm:$0xf]
    %v452 = vld [vmem:[#allocation2 + $0x194] sm:$0xf]
    %v453 = vld [vmem:[#allocation2 + $0x198] sm:$0xf]
    %v454 = vld [vmem:[#allocation2 + $0x19c] sm:$0xf]
    %v455 = vld [vmem:[#allocation2 + $0x1a0] sm:$0xf]
    %v456 = vld [vmem:[#allocation2 + $0x1a4] sm:$0xf]
    %v457 = vld [vmem:[#allocation2 + $0x1a8] sm:$0xf]
    %v458 = vld [vmem:[#allocation2 + $0x1ac] sm:$0xf]
    %v459 = vld [vmem:[#allocation2 + $0x1b0] sm:$0xf]
    %v460 = vld [vmem:[#allocation2 + $0x1b4] sm:$0xf]
    %v461 = vld [vmem:[#allocation2 + $0x1b8] sm:$0xf]
    %v462 = vld [vmem:[#allocation2 + $0x1bc] sm:$0xf]
    %v463 = vld [vmem:[#allocation2 + $0x1c0] sm:$0xf]
    %v464 = vld [vmem:[#allocation2 + $0x1c4] sm:$0xf]
    %v465 = vld [vmem:[#allocation2 + $0x1c8] sm:$0xf]
    %v466 = vld [vmem:[#allocation2 + $0x1cc] sm:$0xf]
    %v467 = vld [vmem:[#allocation2 + $0x1d0] sm:$0xf]
    %v468 = vld [vmem:[#allocation2 + $0x1d4] sm:$0xf]
    %v469 = vld [vmem:[#allocation2 + $0x1d8] sm:$0xf]
    %v470 = vld [vmem:[#allocation2 + $0x1dc] sm:$0xf]
    %v471 = vld [vmem:[#allocation2 + $0x1e0] sm:$0xf]
    %v472 = vld [vmem:[#allocation2 + $0x1e4] sm:$0xf]
    %v473 = vld [vmem:[#allocation2 + $0x1e8] sm:$0xf]
    %v474 = vld [vmem:[#allocation2 + $0x1ec] sm:$0xf]
    %v475 = vld [vmem:[#allocation2 + $0x1f0] sm:$0xf]
    %v476 = vld [vmem:[#allocation2 + $0x1f4] sm:$0xf]
    %v477 = vld [vmem:[#allocation2 + $0x1f8] sm:$0xf]
    %v478 = vld [vmem:[#allocation2 + $0x1fc] sm:$0xf]
    %v479 = vld [vmem:[#allocation2 + $0x200] sm:$0xf]
    %v480 = vld [vmem:[#allocation2 + $0x204] sm:$0xf]
    %v481 = vld [vmem:[#allocation2 + $0x208] sm:$0xf]
    %v482 = vld [vmem:[#allocation2 + $0x20c] sm:$0xf]
    %v483 = vld [vmem:[#allocation2 + $0x210] sm:$0xf]
    %v484 = vld [vmem:[#allocation2 + $0x214] sm:$0xf]
    %v485 = vld [vmem:[#allocation2 + $0x218] sm:$0xf]
    %v486 = vld [vmem:[#allocation2 + $0x21c] sm:$0xf]
    %v487 = vld [vmem:[#allocation2 + $0x220] sm:$0xf]
    %v488 = vld [vmem:[#allocation2 + $0x224] sm:$0xf]
    %v489 = vld [vmem:[#allocation2 + $0x228] sm:$0xf]
    %v490 = vld [vmem:[#allocation2 + $0x22c] sm:$0xf]
    %v491 = vld [vmem:[#allocation2 + $0x230] sm:$0xf]
    %v492 = vld [vmem:[#allocation2 + $0x234] sm:$0xf]
    %v493 = vld [vmem:[#allocation2 + $0x238] sm:$0xf]
    %v494 = vld [vmem:[#allocation2 + $0x23c] sm:$0xf]
    %v495 = vld [vmem:[#allocation2 + $0x240] sm:$0xf]
    %v496 = vld [vmem:[#allocation2 + $0x244] sm:$0xf]
    %v497 = vld [vmem:[#allocation2 + $0x248] sm:$0xf]
    %v498 = vld [vmem:[#allocation2 + $0x24c] sm:$0xf]
    %v499 = vld [vmem:[#allocation2 + $0x250] sm:$0xf]
    %v500 = vld [vmem:[#allocation2 + $0x254] sm:$0xf]
    %v501 = vld [vmem:[#allocation2 + $0x258] sm:$0xf]
    %v502 = vld [vmem:[#allocation2 + $0x25c] sm:$0xf]
    %v503 = vld [vmem:[#allocation2 + $0x260] sm:$0xf]
    %v504 = vld [vmem:[#allocation2 + $0x264] sm:$0xf]
    %v505 = vld [vmem:[#allocation2 + $0x268] sm:$0xf]
    %v506 = vld [vmem:[#allocation2 + $0x26c] sm:$0xf]
    %v507 = vld [vmem:[#allocation2 + $0x270] sm:$0xf]
    %v508 = vld [vmem:[#allocation2 + $0x274] sm:$0xf]
    %v509 = vld [vmem:[#allocation2 + $0x278] sm:$0xf]
    %v510 = vld [vmem:[#allocation2 + $0x27c] sm:$0xf]
    %v511 = vld [vmem:[#allocation2 + $0x280] sm:$0xf]
    %v512 = vld [vmem:[#allocation2 + $0x284] sm:$0xf]
    %v513 = vld [vmem:[#allocation2 + $0x288] sm:$0xf]
    %v514 = vld [vmem:[#allocation2 + $0x28c] sm:$0xf]
    %v515 = vld [vmem:[#allocation2 + $0x290] sm:$0xf]
    %v516 = vld [vmem:[#allocation2 + $0x294] sm:$0xf]
    %v517 = vld [vmem:[#allocation2 + $0x298] sm:$0xf]
    %v518 = vld [vmem:[#allocation2 + $0x29c] sm:$0xf]
    %v519 = vld [vmem:[#allocation2 + $0x2a0] sm:$0xf]
    %v520 = vld [vmem:[#allocation2 + $0x2a4] sm:$0xf]
    %v521 = vld [vmem:[#allocation2 + $0x2a8] sm:$0xf]
    %v522 = vld [vmem:[#allocation2 + $0x2ac] sm:$0xf]
    %v523 = vld [vmem:[#allocation2 + $0x2b0] sm:$0xf]
    %v524 = vld [vmem:[#allocation2 + $0x2b4] sm:$0xf]
    %v525 = vld [vmem:[#allocation2 + $0x2b8] sm:$0xf]
    %v526 = vld [vmem:[#allocation2 + $0x2bc] sm:$0xf]
    %v527 = vld [vmem:[#allocation2 + $0x2c0] sm:$0xf]
    %v528 = vld [vmem:[#allocation2 + $0x2c4] sm:$0xf]
    %v529 = vld [vmem:[#allocation2 + $0x2c8] sm:$0xf]
    %v530 = vld [vmem:[#allocation2 + $0x2cc] sm:$0xf]
    %v531 = vld [vmem:[#allocation2 + $0x2d0] sm:$0xf]
    %v532 = vld [vmem:[#allocation2 + $0x2d4] sm:$0xf]
    %v533 = vld [vmem:[#allocation2 + $0x2d8] sm:$0xf]
    %v534 = vld [vmem:[#allocation2 + $0x2dc] sm:$0xf]
    %v535 = vld [vmem:[#allocation2 + $0x2e0] sm:$0xf]
    %v536 = vld [vmem:[#allocation2 + $0x2e4] sm:$0xf]
    %v537 = vld [vmem:[#allocation2 + $0x2e8] sm:$0xf]
    %v538 = vld [vmem:[#allocation2 + $0x2ec] sm:$0xf]
    %v539 = vld [vmem:[#allocation2 + $0x2f0] sm:$0xf]
    %v540 = vld [vmem:[#allocation2 + $0x2f4] sm:$0xf]
    %v541 = vld [vmem:[#allocation2 + $0x2f8] sm:$0xf]
    %v542 = vld [vmem:[#allocation2 + $0x2fc] sm:$0xf]
    %v543 = vld [vmem:[#allocation2 + $0x300] sm:$0xf]
    %v544 = vld [vmem:[#allocation2 + $0x304] sm:$0xf]
    %v545 = vld [vmem:[#allocation2 + $0x308] sm:$0xf]
    %v546 = vld [vmem:[#allocation2 + $0x30c] sm:$0xf]
    %v547 = vld [vmem:[#allocation2 + $0x310] sm:$0xf]
    %v548 = vld [vmem:[#allocation2 + $0x314] sm:$0xf]
    %v549 = vld [vmem:[#allocation2 + $0x318] sm:$0xf]
    %v550 = vld [vmem:[#allocation2 + $0x31c] sm:$0xf]
    %v551 = vld [vmem:[#allocation2 + $0x320] sm:$0xf]
    %v552 = vld [vmem:[#allocation2 + $0x324] sm:$0xf]
    %v553 = vld [vmem:[#allocation2 + $0x328] sm:$0xf]
    %v554 = vld [vmem:[#allocation2 + $0x32c] sm:$0xf]
    %v555 = vld [vmem:[#allocation2 + $0x330] sm:$0xf]
    %v556 = vld [vmem:[#allocation2 + $0x334] sm:$0xf]
    %v557 = vld [vmem:[#allocation2 + $0x338] sm:$0xf]
    %v558 = vld [vmem:[#allocation2 + $0x33c] sm:$0xf]
    %v559 = vld [vmem:[#allocation2 + $0x340] sm:$0xf]
    %v560 = vld [vmem:[#allocation2 + $0x344] sm:$0xf]
    %v561 = vld [vmem:[#allocation2 + $0x348] sm:$0xf]
    %v562 = vld [vmem:[#allocation2 + $0x34c] sm:$0xf]
    %v563 = vld [vmem:[#allocation2 + $0x350] sm:$0xf]
    %v564 = vld [vmem:[#allocation2 + $0x354] sm:$0xf]
    %v565 = vld [vmem:[#allocation2 + $0x358] sm:$0xf]
    %v566 = vld [vmem:[#allocation2 + $0x35c] sm:$0xf]
    %v567 = vld [vmem:[#allocation2 + $0x360] sm:$0xf]
    %v568 = vld [vmem:[#allocation2 + $0x364] sm:$0xf]
    %v569 = vld [vmem:[#allocation2 + $0x368] sm:$0xf]
    %v570 = vld [vmem:[#allocation2 + $0x36c] sm:$0xf]
    %v571 = vld [vmem:[#allocation2 + $0x370] sm:$0xf]
    %v572 = vld [vmem:[#allocation2 + $0x374] sm:$0xf]
    %v573 = vld [vmem:[#allocation2 + $0x378] sm:$0xf]
    %v574 = vld [vmem:[#allocation2 + $0x37c] sm:$0xf]
    %v575 = vld [vmem:[#allocation2 + $0x380] sm:$0xf]
    %v576 = vld [vmem:[#allocation2 + $0x384] sm:$0xf]
    %v577 = vld [vmem:[#allocation2 + $0x388] sm:$0xf]
    %v578 = vld [vmem:[#allocation2 + $0x38c] sm:$0xf]
    %v579 = vld [vmem:[#allocation2 + $0x390] sm:$0xf]
    %v580 = vld [vmem:[#allocation2 + $0x394] sm:$0xf]
    %v581 = vld [vmem:[#allocation2 + $0x398] sm:$0xf]
    %v582 = vld [vmem:[#allocation2 + $0x39c] sm:$0xf]
    %v583 = vld [vmem:[#allocation2 + $0x3a0] sm:$0xf]
    %v584 = vld [vmem:[#allocation2 + $0x3a4] sm:$0xf]
    %v585 = vld [vmem:[#allocation2 + $0x3a8] sm:$0xf]
    %v586 = vld [vmem:[#allocation2 + $0x3ac] sm:$0xf]
    %v587 = vld [vmem:[#allocation2 + $0x3b0] sm:$0xf]
    %v588 = vld [vmem:[#allocation2 + $0x3b4] sm:$0xf]
    %v589 = vld [vmem:[#allocation2 + $0x3b8] sm:$0xf]
    %v590 = vld [vmem:[#allocation2 + $0x3bc] sm:$0xf]
    %v591 = vld [vmem:[#allocation2 + $0x3c0] sm:$0xf]
    %v592 = vld [vmem:[#allocation2 + $0x3c4] sm:$0xf]
    %v593 = vld [vmem:[#allocation2 + $0x3c8] sm:$0xf]
    %v594 = vld [vmem:[#allocation2 + $0x3cc] sm:$0xf]
    %v595 = vld [vmem:[#allocation2 + $0x3d0] sm:$0xf]
    %v596 = vld [vmem:[#allocation2 + $0x3d4] sm:$0xf]
    %v597 = vld [vmem:[#allocation2 + $0x3d8] sm:$0xf]
    %v598 = vld [vmem:[#allocation2 + $0x3dc] sm:$0xf]
    %v599 = vld [vmem:[#allocation2 + $0x3e0] sm:$0xf]
    %v600 = vld [vmem:[#allocation2 + $0x3e4] sm:$0xf]
    %v601 = vld [vmem:[#allocation2 + $0x3e8] sm:$0xf]
    %v602 = vld [vmem:[#allocation2 + $0x3ec] sm:$0xf]
    %v603 = vld [vmem:[#allocation2 + $0x3f0] sm:$0xf]
    %v604 = vld [vmem:[#allocation2 + $0x3f4] sm:$0xf]
    %v605 = vld [vmem:[#allocation2 + $0x3f8] sm:$0xf]
    %v606 = vld [vmem:[#allocation2 + $0x3fc] sm:$0xf]
    %v607 = vld [vmem:[#allocation2 + $0x400] sm:$0xf]
    %v608 = vld [vmem:[#allocation2 + $0x404] sm:$0xf]
    %v609 = vld [vmem:[#allocation2 + $0x408] sm:$0xf]
    %v610 = vld [vmem:[#allocation2 + $0x40c] sm:$0xf]
    %v611 = vld [vmem:[#allocation2 + $0x410] sm:$0xf]
    %v612 = vld [vmem:[#allocation2 + $0x414] sm:$0xf]
    %v613 = vld [vmem:[#allocation2 + $0x418] sm:$0xf]
    %v614 = vld [vmem:[#allocation2 + $0x41c] sm:$0xf]
    %v615 = vld [vmem:[#allocation2 + $0x420] sm:$0xf]
    %v616 = vld [vmem:[#allocation2 + $0x424] sm:$0xf]
    %v617 = vld [vmem:[#allocation2 + $0x428] sm:$0xf]
    %v618 = vld [vmem:[#allocation2 + $0x42c] sm:$0xf]
    %v619 = vld [vmem:[#allocation2 + $0x430] sm:$0xf]
    %v620 = vld [vmem:[#allocation2 + $0x434] sm:$0xf]
    %v621 = vld [vmem:[#allocation2 + $0x438] sm:$0xf]
    %v622 = vld [vmem:[#allocation2 + $0x43c] sm:$0xf]
    %v623 = vld [vmem:[#allocation2 + $0x440] sm:$0xf]
    %v624 = vld [vmem:[#allocation2 + $0x444] sm:$0xf]
    %v625 = vld [vmem:[#allocation2 + $0x448] sm:$0xf]
    %v626 = vld [vmem:[#allocation2 + $0x44c] sm:$0xf]
    %v627 = vld [vmem:[#allocation2 + $0x450] sm:$0xf]
    %v628 = vld [vmem:[#allocation2 + $0x454] sm:$0xf]
    %v629 = vld [vmem:[#allocation2 + $0x458] sm:$0xf]
    %v630 = vld [vmem:[#allocation2 + $0x45c] sm:$0xf]
    %v631 = vld [vmem:[#allocation2 + $0x460] sm:$0xf]
    %v632 = vld [vmem:[#allocation2 + $0x464] sm:$0xf]
    %v633 = vld [vmem:[#allocation2 + $0x468] sm:$0xf]
    %v634 = vld [vmem:[#allocation2 + $0x46c] sm:$0xf]
    %v635 = vld [vmem:[#allocation2 + $0x470] sm:$0xf]
    %v636 = vld [vmem:[#allocation2 + $0x474] sm:$0xf]
    %v637 = vld [vmem:[#allocation2 + $0x478] sm:$0xf]
    %v638 = vld [vmem:[#allocation2 + $0x47c] sm:$0xf]
    %v639 = vld [vmem:[#allocation2 + $0x480] sm:$0xf]
    %v640 = vld [vmem:[#allocation2 + $0x484] sm:$0xf]
    %v641 = vld [vmem:[#allocation2 + $0x488] sm:$0xf]
    %v642 = vld [vmem:[#allocation2 + $0x48c] sm:$0xf]
    %v643 = vld [vmem:[#allocation2 + $0x490] sm:$0xf]
    %v644 = vld [vmem:[#allocation2 + $0x494] sm:$0xf]
    %v645 = vld [vmem:[#allocation2 + $0x498] sm:$0xf]
    %v646 = vld [vmem:[#allocation2 + $0x49c] sm:$0xf]
    %v647 = vld [vmem:[#allocation2 + $0x4a0] sm:$0xf]
    %v648 = vld [vmem:[#allocation2 + $0x4a4] sm:$0xf]
    %v649 = vld [vmem:[#allocation2 + $0x4a8] sm:$0xf]
    %v650 = vld [vmem:[#allocation2 + $0x4ac] sm:$0xf]
    %v651 = vld [vmem:[#allocation2 + $0x4b0] sm:$0xf]
    %v652 = vld [vmem:[#allocation2 + $0x4b4] sm:$0xf]
    %v653 = vld [vmem:[#allocation2 + $0x4b8] sm:$0xf]
    %v654 = vld [vmem:[#allocation2 + $0x4bc] sm:$0xf]
    %v655 = vld [vmem:[#allocation2 + $0x4c0] sm:$0xf]
    %v656 = vld [vmem:[#allocation2 + $0x4c4] sm:$0xf]
    %v657 = vld [vmem:[#allocation2 + $0x4c8] sm:$0xf]
    %v658 = vld [vmem:[#allocation2 + $0x4cc] sm:$0xf]
    %v659 = vld [vmem:[#allocation2 + $0x4d0] sm:$0xf]
    %v660 = vld [vmem:[#allocation2 + $0x4d4] sm:$0xf]
    %v661 = vld [vmem:[#allocation2 + $0x4d8] sm:$0xf]
    %v662 = vld [vmem:[#allocation2 + $0x4dc] sm:$0xf]
    %v663 = vld [vmem:[#allocation2 + $0x4e0] sm:$0xf]
    %v664 = vld [vmem:[#allocation2 + $0x4e4] sm:$0xf]
    %v665 = vld [vmem:[#allocation2 + $0x4e8] sm:$0xf]
    %v666 = vld [vmem:[#allocation2 + $0x4ec] sm:$0xf]
    %v667 = vld [vmem:[#allocation2 + $0x4f0] sm:$0xf]
    %v668 = vld [vmem:[#allocation2 + $0x4f4] sm:$0xf]
    %v669 = vld [vmem:[#allocation2 + $0x4f8] sm:$0xf]
    %v670 = vld [vmem:[#allocation2 + $0x4fc] sm:$0xf]
    %v671 = vld [vmem:[#allocation2 + $0x500] sm:$0xf]
    %v672 = vld [vmem:[#allocation2 + $0x504] sm:$0xf]
    %v673 = vld [vmem:[#allocation2 + $0x508] sm:$0xf]
    %v674 = vld [vmem:[#allocation2 + $0x50c] sm:$0xf]
    %v675 = vld [vmem:[#allocation2 + $0x510] sm:$0xf]
    %v676 = vld [vmem:[#allocation2 + $0x514] sm:$0xf]
    %v677 = vld [vmem:[#allocation2 + $0x518] sm:$0xf]
    %v678 = vld [vmem:[#allocation2 + $0x51c] sm:$0xf]
    %v679 = vld [vmem:[#allocation2 + $0x520] sm:$0xf]
    %v680 = vld [vmem:[#allocation2 + $0x524] sm:$0xf]
    %v681 = vld [vmem:[#allocation2 + $0x528] sm:$0xf]
    %v682 = vld [vmem:[#allocation2 + $0x52c] sm:$0xf]
    %v683 = vld [vmem:[#allocation2 + $0x530] sm:$0xf]
    %v684 = vld [vmem:[#allocation2 + $0x534] sm:$0xf]
    %v685 = vld [vmem:[#allocation2 + $0x538] sm:$0xf]
    %v686 = vld [vmem:[#allocation2 + $0x53c] sm:$0xf]
    %v687 = vld [vmem:[#allocation2 + $0x540] sm:$0xf]
    %v688 = vld [vmem:[#allocation2 + $0x544] sm:$0xf]
    %v689 = vld [vmem:[#allocation2 + $0x548] sm:$0xf]
    %v690 = vld [vmem:[#allocation2 + $0x54c] sm:$0xf]
    %v691 = vld [vmem:[#allocation2 + $0x550] sm:$0xf]
    %v692 = vld [vmem:[#allocation2 + $0x554] sm:$0xf]
    %v693 = vld [vmem:[#allocation2 + $0x558] sm:$0xf]
    %v694 = vld [vmem:[#allocation2 + $0x55c] sm:$0xf]
    %v695 = vld [vmem:[#allocation2 + $0x560] sm:$0xf]
    %v696 = vld [vmem:[#allocation2 + $0x564] sm:$0xf]
    %v697 = vld [vmem:[#allocation2 + $0x568] sm:$0xf]
    %v698 = vld [vmem:[#allocation2 + $0x56c] sm:$0xf]
    %v699 = vld [vmem:[#allocation2 + $0x570] sm:$0xf]
    %v700 = vld [vmem:[#allocation2 + $0x574] sm:$0xf]
    %v701 = vld [vmem:[#allocation2 + $0x578] sm:$0xf]
    %v702 = vld [vmem:[#allocation2 + $0x57c] sm:$0xf]
    %v703 = vld [vmem:[#allocation2 + $0x580] sm:$0xf]
    %v704 = vld [vmem:[#allocation2 + $0x584] sm:$0xf]
    %v705 = vld [vmem:[#allocation2 + $0x588] sm:$0xf]
    %v706 = vld [vmem:[#allocation2 + $0x58c] sm:$0xf]
    %v707 = vld [vmem:[#allocation2 + $0x590] sm:$0xf]
    %v708 = vld [vmem:[#allocation2 + $0x594] sm:$0xf]
    %v709 = vld [vmem:[#allocation2 + $0x598] sm:$0xf]
    %v710 = vld [vmem:[#allocation2 + $0x59c] sm:$0xf]
    %v711 = vld [vmem:[#allocation2 + $0x5a0] sm:$0xf]
    %v712 = vld [vmem:[#allocation2 + $0x5a4] sm:$0xf]
    %v713 = vld [vmem:[#allocation2 + $0x5a8] sm:$0xf]
    %v714 = vld [vmem:[#allocation2 + $0x5ac] sm:$0xf]
    %v715 = vld [vmem:[#allocation2 + $0x5b0] sm:$0xf]
    %v716 = vld [vmem:[#allocation2 + $0x5b4] sm:$0xf]
    %v717 = vld [vmem:[#allocation2 + $0x5b8] sm:$0xf]
    %v718 = vld [vmem:[#allocation2 + $0x5bc] sm:$0xf]
    %v719 = vld [vmem:[#allocation2 + $0x5c0] sm:$0xf]
    %v720 = vld [vmem:[#allocation2 + $0x5c4] sm:$0xf]
    %v721 = vld [vmem:[#allocation2 + $0x5c8] sm:$0xf]
    %v722 = vld [vmem:[#allocation2 + $0x5cc] sm:$0xf]
    %v723 = vld [vmem:[#allocation2 + $0x5d0] sm:$0xf]
    %v724 = vld [vmem:[#allocation2 + $0x5d4] sm:$0xf]
    %v725 = vld [vmem:[#allocation2 + $0x5d8] sm:$0xf]
    %v726 = vld [vmem:[#allocation2 + $0x5dc] sm:$0xf]
    %v727 = vld [vmem:[#allocation2 + $0x5e0] sm:$0xf]
    %v728 = vld [vmem:[#allocation2 + $0x5e4] sm:$0xf]
    %v729 = vld [vmem:[#allocation2 + $0x5e8] sm:$0xf]
    %v730 = vld [vmem:[#allocation2 + $0x5ec] sm:$0xf]
    %v731 = vld [vmem:[#allocation2 + $0x5f0] sm:$0xf]
    %v732 = vld [vmem:[#allocation2 + $0x5f4] sm:$0xf]
    %v733 = vld [vmem:[#allocation2 + $0x5f8] sm:$0xf]
    %v734 = vld [vmem:[#allocation2 + $0x5fc] sm:$0xf]
    %v735 = vld [vmem:[#allocation2 + $0x600] sm:$0xf]
    %v736 = vld [vmem:[#allocation2 + $0x604] sm:$0xf]
    %v737 = vld [vmem:[#allocation2 + $0x608] sm:$0xf]
    %v738 = vld [vmem:[#allocation2 + $0x60c] sm:$0xf]
    %v739 = vld [vmem:[#allocation2 + $0x610] sm:$0xf]
    %v740 = vld [vmem:[#allocation2 + $0x614] sm:$0xf]
    %v741 = vld [vmem:[#allocation2 + $0x618] sm:$0xf]
    %v742 = vld [vmem:[#allocation2 + $0x61c] sm:$0xf]
    %v743 = vld [vmem:[#allocation2 + $0x620] sm:$0xf]
    %v744 = vld [vmem:[#allocation2 + $0x624] sm:$0xf]
    %v745 = vld [vmem:[#allocation2 + $0x628] sm:$0xf]
    %v746 = vld [vmem:[#allocation2 + $0x62c] sm:$0xf]
    %v747 = vld [vmem:[#allocation2 + $0x630] sm:$0xf]
    %v748 = vld [vmem:[#allocation2 + $0x634] sm:$0xf]
    %v749 = vld [vmem:[#allocation2 + $0x638] sm:$0xf]
    %v750 = vld [vmem:[#allocation2 + $0x63c] sm:$0xf]
    %v751 = vld [vmem:[#allocation2 + $0x640] sm:$0xf]
    %v752 = vld [vmem:[#allocation2 + $0x644] sm:$0xf]
    %v753 = vld [vmem:[#allocation2 + $0x648] sm:$0xf]
    %v754 = vld [vmem:[#allocation2 + $0x64c] sm:$0xf]
    %v755 = vld [vmem:[#allocation2 + $0x650] sm:$0xf]
    %v756 = vld [vmem:[#allocation2 + $0x654] sm:$0xf]
    %v757 = vld [vmem:[#allocation2 + $0x658] sm:$0xf]
    %v758 = vld [vmem:[#allocation2 + $0x65c] sm:$0xf]
    %v759 = vld [vmem:[#allocation2 + $0x660] sm:$0xf]
    %v760 = vld [vmem:[#allocation2 + $0x664] sm:$0xf]
    %v761 = vld [vmem:[#allocation2 + $0x668] sm:$0xf]
    %v762 = vld [vmem:[#allocation2 + $0x66c] sm:$0xf]
    %v763 = vld [vmem:[#allocation2 + $0x670] sm:$0xf]
    %v764 = vld [vmem:[#allocation2 + $0x674] sm:$0xf]
    %v765 = vld [vmem:[#allocation2 + $0x678] sm:$0xf]
    %v766 = vld [vmem:[#allocation2 + $0x67c] sm:$0xf]
    %v767 = vld [vmem:[#allocation2 + $0x680] sm:$0xf]
    %v768 = vld [vmem:[#allocation2 + $0x684] sm:$0xf]
    %v769 = vld [vmem:[#allocation2 + $0x688] sm:$0xf]
    %v770 = vld [vmem:[#allocation2 + $0x68c] sm:$0xf]
    %v771 = vld [vmem:[#allocation2 + $0x690] sm:$0xf]
    %v772 = vld [vmem:[#allocation2 + $0x694] sm:$0xf]
    %v773 = vld [vmem:[#allocation2 + $0x698] sm:$0xf]
    %v774 = vld [vmem:[#allocation2 + $0x69c] sm:$0xf]
    %v775 = vld [vmem:[#allocation2 + $0x6a0] sm:$0xf]
    %v776 = vld [vmem:[#allocation2 + $0x6a4] sm:$0xf]
    %v777 = vld [vmem:[#allocation2 + $0x6a8] sm:$0xf]
    %v778 = vld [vmem:[#allocation2 + $0x6ac] sm:$0xf]
    %v779 = vld [vmem:[#allocation2 + $0x6b0] sm:$0xf]
    %v780 = vld [vmem:[#allocation2 + $0x6b4] sm:$0xf]
    %v781 = vld [vmem:[#allocation2 + $0x6b8] sm:$0xf]
    %v782 = vld [vmem:[#allocation2 + $0x6bc] sm:$0xf]
    %v783 = vld [vmem:[#allocation2 + $0x6c0] sm:$0xf]
    %v784 = vld [vmem:[#allocation2 + $0x6c4] sm:$0xf]
    %v785 = vld [vmem:[#allocation2 + $0x6c8] sm:$0xf]
    %v786 = vld [vmem:[#allocation2 + $0x6cc] sm:$0xf]
    %v787 = vld [vmem:[#allocation2 + $0x6d0] sm:$0xf]
    %v788 = vld [vmem:[#allocation2 + $0x6d4] sm:$0xf]
    %v789 = vld [vmem:[#allocation2 + $0x6d8] sm:$0xf]
    %v790 = vld [vmem:[#allocation2 + $0x6dc] sm:$0xf]
    %v791 = vld [vmem:[#allocation2 + $0x6e0] sm:$0xf]
    %v792 = vld [vmem:[#allocation2 + $0x6e4] sm:$0xf]
    %v793 = vld [vmem:[#allocation2 + $0x6e8] sm:$0xf]
    %v794 = vld [vmem:[#allocation2 + $0x6ec] sm:$0xf]
    %v795 = vld [vmem:[#allocation2 + $0x6f0] sm:$0xf]
    %v796 = vld [vmem:[#allocation2 + $0x6f4] sm:$0xf]
    %v797 = vld [vmem:[#allocation2 + $0x6f8] sm:$0xf]
    %v798 = vld [vmem:[#allocation2 + $0x6fc] sm:$0xf]
    %v799 = vld [vmem:[#allocation2 + $0x700] sm:$0xf]
    %v800 = vld [vmem:[#allocation2 + $0x704] sm:$0xf]
    %v801 = vld [vmem:[#allocation2 + $0x708] sm:$0xf]
    %v802 = vld [vmem:[#allocation2 + $0x70c] sm:$0xf]
    %v803 = vld [vmem:[#allocation2 + $0x710] sm:$0xf]
    %v804 = vld [vmem:[#allocation2 + $0x714] sm:$0xf]
    %v805 = vld [vmem:[#allocation2 + $0x718] sm:$0xf]
    %v806 = vld [vmem:[#allocation2 + $0x71c] sm:$0xf]
    %v807 = vld [vmem:[#allocation2 + $0x720] sm:$0xf]
    %v808 = vld [vmem:[#allocation2 + $0x724] sm:$0xf]
    %v809 = vld [vmem:[#allocation2 + $0x728] sm:$0xf]
    %v810 = vld [vmem:[#allocation2 + $0x72c] sm:$0xf]
    %v811 = vld [vmem:[#allocation2 + $0x730] sm:$0xf]
    %v812 = vld [vmem:[#allocation2 + $0x734] sm:$0xf]
    %v813 = vld [vmem:[#allocation2 + $0x738] sm:$0xf]
    %v814 = vld [vmem:[#allocation2 + $0x73c] sm:$0xf]
    %v815 = vld [vmem:[#allocation2 + $0x740] sm:$0xf]
    %v816 = vld [vmem:[#allocation2 + $0x744] sm:$0xf]
    %v817 = vld [vmem:[#allocation2 + $0x748] sm:$0xf]
    %v818 = vld [vmem:[#allocation2 + $0x74c] sm:$0xf]
    %v819 = vld [vmem:[#allocation2 + $0x750] sm:$0xf]
    %v820 = vld [vmem:[#allocation2 + $0x754] sm:$0xf]
    %v821 = vld [vmem:[#allocation2 + $0x758] sm:$0xf]
    %v822 = vld [vmem:[#allocation2 + $0x75c] sm:$0xf]
    %v823 = vld [vmem:[#allocation2 + $0x760] sm:$0xf]
    %v824 = vld [vmem:[#allocation2 + $0x764] sm:$0xf]
    %v825 = vld [vmem:[#allocation2 + $0x768] sm:$0xf]
    %v826 = vld [vmem:[#allocation2 + $0x76c] sm:$0xf]
    %v827 = vld [vmem:[#allocation2 + $0x770] sm:$0xf]
    %v828 = vld [vmem:[#allocation2 + $0x774] sm:$0xf]
    %v829 = vld [vmem:[#allocation2 + $0x778] sm:$0xf]
    %v830 = vld [vmem:[#allocation2 + $0x77c] sm:$0xf]
    %v831 = vld [vmem:[#allocation2 + $0x780] sm:$0xf]
    %v832 = vld [vmem:[#allocation2 + $0x784] sm:$0xf]
    %v833 = vld [vmem:[#allocation2 + $0x788] sm:$0xf]
    %v834 = vld [vmem:[#allocation2 + $0x78c] sm:$0xf]
    %v835 = vld [vmem:[#allocation2 + $0x790] sm:$0xf]
    %v836 = vld [vmem:[#allocation2 + $0x794] sm:$0xf]
    %v837 = vld [vmem:[#allocation2 + $0x798] sm:$0xf]
    %v838 = vld [vmem:[#allocation2 + $0x79c] sm:$0xf]
    %v839 = vld [vmem:[#allocation2 + $0x7a0] sm:$0xf]
    %v840 = vld [vmem:[#allocation2 + $0x7a4] sm:$0xf]
    %v841 = vld [vmem:[#allocation2 + $0x7a8] sm:$0xf]
    %v842 = vld [vmem:[#allocation2 + $0x7ac] sm:$0xf]
    %v843 = vld [vmem:[#allocation2 + $0x7b0] sm:$0xf]
    %v844 = vld [vmem:[#allocation2 + $0x7b4] sm:$0xf]
    %v845 = vld [vmem:[#allocation2 + $0x7b8] sm:$0xf]
    %v846 = vld [vmem:[#allocation2 + $0x7bc] sm:$0xf]
    %v847 = vld [vmem:[#allocation2 + $0x7c0] sm:$0xf]
    %v848 = vld [vmem:[#allocation2 + $0x7c4] sm:$0xf]
    %v849 = vld [vmem:[#allocation2 + $0x7c8] sm:$0xf]
    %v850 = vld [vmem:[#allocation2 + $0x7cc] sm:$0xf]
    %v851 = vld [vmem:[#allocation2 + $0x7d0] sm:$0xf]
    %v852 = vld [vmem:[#allocation2 + $0x7d4] sm:$0xf]
    %v853 = vld [vmem:[#allocation2 + $0x7d8] sm:$0xf]
    %v854 = vld [vmem:[#allocation2 + $0x7dc] sm:$0xf]
    %v855 = vld [vmem:[#allocation2 + $0x7e0] sm:$0xf]
    %v856 = vld [vmem:[#allocation2 + $0x7e4] sm:$0xf]
    %v857 = vld [vmem:[#allocation2 + $0x7e8] sm:$0xf]
    %v858 = vld [vmem:[#allocation2 + $0x7ec] sm:$0xf]
    %v859 = vld [vmem:[#allocation2 + $0x7f0] sm:$0xf]
    %v860 = vld [vmem:[#allocation2 + $0x7f4] sm:$0xf]
    %v861 = vld [vmem:[#allocation2 + $0x7f8] sm:$0xf]
    %v862 = vld [vmem:[#allocation2 + $0x7fc] sm:$0xf]
    %v863 = vunpack.c.l.bf16 %v351
    %v864 = vunpack.c.l.bf16 %v352
    %v865 = vunpack.c.l.bf16 %v353
    %v866 = vunpack.c.l.bf16 %v354
    %v867 = vunpack.c.l.bf16 %v355
    %v868 = vunpack.c.l.bf16 %v356
    %v869 = vunpack.c.l.bf16 %v357
    %v870 = vunpack.c.l.bf16 %v358
    %v871 = vunpack.c.l.bf16 %v359
    %v872 = vunpack.c.l.bf16 %v360
    %v873 = vunpack.c.l.bf16 %v361
    %v874 = vunpack.c.l.bf16 %v362
    %v875 = vunpack.c.l.bf16 %v363
    %v876 = vunpack.c.l.bf16 %v364
    %v877 = vunpack.c.l.bf16 %v365
    %v878 = vunpack.c.l.bf16 %v366
    %v879 = vunpack.c.l.bf16 %v367
    %v880 = vunpack.c.l.bf16 %v368
    %v881 = vunpack.c.l.bf16 %v369
    %v882 = vunpack.c.l.bf16 %v370
    %v883 = vunpack.c.l.bf16 %v371
    %v884 = vunpack.c.l.bf16 %v372
    %v885 = vunpack.c.l.bf16 %v373
    %v886 = vunpack.c.l.bf16 %v374
    %v887 = vunpack.c.l.bf16 %v375
    %v888 = vunpack.c.l.bf16 %v376
    %v889 = vunpack.c.l.bf16 %v377
    %v890 = vunpack.c.l.bf16 %v378
    %v891 = vunpack.c.l.bf16 %v379
    %v892 = vunpack.c.l.bf16 %v380
    %v893 = vunpack.c.l.bf16 %v381
    %v894 = vunpack.c.l.bf16 %v382
    %v895 = vunpack.c.l.bf16 %v383
    %v896 = vunpack.c.l.bf16 %v384
    %v897 = vunpack.c.l.bf16 %v385
    %v898 = vunpack.c.l.bf16 %v386
    %v899 = vunpack.c.l.bf16 %v387
    %v900 = vunpack.c.l.bf16 %v388
    %v901 = vunpack.c.l.bf16 %v389
    %v902 = vunpack.c.l.bf16 %v390
    %v903 = vunpack.c.l.bf16 %v391
    %v904 = vunpack.c.l.bf16 %v392
    %v905 = vunpack.c.l.bf16 %v393
    %v906 = vunpack.c.l.bf16 %v394
    %v907 = vunpack.c.l.bf16 %v395
    %v908 = vunpack.c.l.bf16 %v396
    %v909 = vunpack.c.l.bf16 %v397
    %v910 = vunpack.c.l.bf16 %v398
    %v911 = vunpack.c.l.bf16 %v399
    %v912 = vunpack.c.l.bf16 %v400
    %v913 = vunpack.c.l.bf16 %v401
    %v914 = vunpack.c.l.bf16 %v402
    %v915 = vunpack.c.l.bf16 %v403
    %v916 = vunpack.c.l.bf16 %v404
    %v917 = vunpack.c.l.bf16 %v405
    %v918 = vunpack.c.l.bf16 %v406
    %v919 = vunpack.c.l.bf16 %v407
    %v920 = vunpack.c.l.bf16 %v408
    %v921 = vunpack.c.l.bf16 %v409
    %v922 = vunpack.c.l.bf16 %v410
    %v923 = vunpack.c.l.bf16 %v411
    %v924 = vunpack.c.l.bf16 %v412
    %v925 = vunpack.c.l.bf16 %v413
    %v926 = vunpack.c.l.bf16 %v414
    %v927 = vunpack.c.l.bf16 %v415
    %v928 = vunpack.c.l.bf16 %v416
    %v929 = vunpack.c.l.bf16 %v417
    %v930 = vunpack.c.l.bf16 %v418
    %v931 = vunpack.c.l.bf16 %v419
    %v932 = vunpack.c.l.bf16 %v420
    %v933 = vunpack.c.l.bf16 %v421
    %v934 = vunpack.c.l.bf16 %v422
    %v935 = vunpack.c.l.bf16 %v423
    %v936 = vunpack.c.l.bf16 %v424
    %v937 = vunpack.c.l.bf16 %v425
    %v938 = vunpack.c.l.bf16 %v426
    %v939 = vunpack.c.l.bf16 %v427
    %v940 = vunpack.c.l.bf16 %v428
    %v941 = vunpack.c.l.bf16 %v429
    %v942 = vunpack.c.l.bf16 %v430
    %v943 = vunpack.c.l.bf16 %v431
    %v944 = vunpack.c.l.bf16 %v432
    %v945 = vunpack.c.l.bf16 %v433
    %v946 = vunpack.c.l.bf16 %v434
    %v947 = vunpack.c.l.bf16 %v435
    %v948 = vunpack.c.l.bf16 %v436
    %v949 = vunpack.c.l.bf16 %v437
    %v950 = vunpack.c.l.bf16 %v438
    %v951 = vunpack.c.l.bf16 %v439
    %v952 = vunpack.c.l.bf16 %v440
    %v953 = vunpack.c.l.bf16 %v441
    %v954 = vunpack.c.l.bf16 %v442
    %v955 = vunpack.c.l.bf16 %v443
    %v956 = vunpack.c.l.bf16 %v444
    %v957 = vunpack.c.l.bf16 %v445
    %v958 = vunpack.c.l.bf16 %v446
    %v959 = vunpack.c.l.bf16 %v447
    %v960 = vunpack.c.l.bf16 %v448
    %v961 = vunpack.c.l.bf16 %v449
    %v962 = vunpack.c.l.bf16 %v450
    %v963 = vunpack.c.l.bf16 %v451
    %v964 = vunpack.c.l.bf16 %v452
    %v965 = vunpack.c.l.bf16 %v453
    %v966 = vunpack.c.l.bf16 %v454
    %v967 = vunpack.c.l.bf16 %v455
    %v968 = vunpack.c.l.bf16 %v456
    %v969 = vunpack.c.l.bf16 %v457
    %v970 = vunpack.c.l.bf16 %v458
    %v971 = vunpack.c.l.bf16 %v459
    %v972 = vunpack.c.l.bf16 %v460
    %v973 = vunpack.c.l.bf16 %v461
    %v974 = vunpack.c.l.bf16 %v462
    %v975 = vunpack.c.l.bf16 %v463
    %v976 = vunpack.c.l.bf16 %v464
    %v977 = vunpack.c.l.bf16 %v465
    %v978 = vunpack.c.l.bf16 %v466
    %v979 = vunpack.c.l.bf16 %v467
    %v980 = vunpack.c.l.bf16 %v468
    %v981 = vunpack.c.l.bf16 %v469
    %v982 = vunpack.c.l.bf16 %v470
    %v983 = vunpack.c.l.bf16 %v471
    %v984 = vunpack.c.l.bf16 %v472
    %v985 = vunpack.c.l.bf16 %v473
    %v986 = vunpack.c.l.bf16 %v474
    %v987 = vunpack.c.l.bf16 %v475
    %v988 = vunpack.c.l.bf16 %v476
    %v989 = vunpack.c.l.bf16 %v477
    %v990 = vunpack.c.l.bf16 %v478
    %v991 = vunpack.c.l.bf16 %v479
    %v992 = vunpack.c.l.bf16 %v480
    %v993 = vunpack.c.l.bf16 %v481
    %v994 = vunpack.c.l.bf16 %v482
    %v995 = vunpack.c.l.bf16 %v483
    %v996 = vunpack.c.l.bf16 %v484
    %v997 = vunpack.c.l.bf16 %v485
    %v998 = vunpack.c.l.bf16 %v486
    %v999 = vunpack.c.l.bf16 %v487
    %v1000 = vunpack.c.l.bf16 %v488
    %v1001 = vunpack.c.l.bf16 %v489
    %v1002 = vunpack.c.l.bf16 %v490
    %v1003 = vunpack.c.l.bf16 %v491
    %v1004 = vunpack.c.l.bf16 %v492
    %v1005 = vunpack.c.l.bf16 %v493
    %v1006 = vunpack.c.l.bf16 %v494
    %v1007 = vunpack.c.l.bf16 %v495
    %v1008 = vunpack.c.l.bf16 %v496
    %v1009 = vunpack.c.l.bf16 %v497
    %v1010 = vunpack.c.l.bf16 %v498
    %v1011 = vunpack.c.l.bf16 %v499
    %v1012 = vunpack.c.l.bf16 %v500
    %v1013 = vunpack.c.l.bf16 %v501
    %v1014 = vunpack.c.l.bf16 %v502
    %v1015 = vunpack.c.l.bf16 %v503
    %v1016 = vunpack.c.l.bf16 %v504
    %v1017 = vunpack.c.l.bf16 %v505
    %v1018 = vunpack.c.l.bf16 %v506
    %v1019 = vunpack.c.l.bf16 %v507
    %v1020 = vunpack.c.l.bf16 %v508
    %v1021 = vunpack.c.l.bf16 %v509
    %v1022 = vunpack.c.l.bf16 %v510
    %v1023 = vunpack.c.l.bf16 %v511
    %v1024 = vunpack.c.l.bf16 %v512
    %v1025 = vunpack.c.l.bf16 %v513
    %v1026 = vunpack.c.l.bf16 %v514
    %v1027 = vunpack.c.l.bf16 %v515
    %v1028 = vunpack.c.l.bf16 %v516
    %v1029 = vunpack.c.l.bf16 %v517
    %v1030 = vunpack.c.l.bf16 %v518
    %v1031 = vunpack.c.l.bf16 %v519
    %v1032 = vunpack.c.l.bf16 %v520
    %v1033 = vunpack.c.l.bf16 %v521
    %v1034 = vunpack.c.l.bf16 %v522
    %v1035 = vunpack.c.l.bf16 %v523
    %v1036 = vunpack.c.l.bf16 %v524
    %v1037 = vunpack.c.l.bf16 %v525
    %v1038 = vunpack.c.l.bf16 %v526
    %v1039 = vunpack.c.l.bf16 %v527
    %v1040 = vunpack.c.l.bf16 %v528
    %v1041 = vunpack.c.l.bf16 %v529
    %v1042 = vunpack.c.l.bf16 %v530
    %v1043 = vunpack.c.l.bf16 %v531
    %v1044 = vunpack.c.l.bf16 %v532
    %v1045 = vunpack.c.l.bf16 %v533
    %v1046 = vunpack.c.l.bf16 %v534
    %v1047 = vunpack.c.l.bf16 %v535
    %v1048 = vunpack.c.l.bf16 %v536
    %v1049 = vunpack.c.l.bf16 %v537
    %v1050 = vunpack.c.l.bf16 %v538
    %v1051 = vunpack.c.l.bf16 %v539
    %v1052 = vunpack.c.l.bf16 %v540
    %v1053 = vunpack.c.l.bf16 %v541
    %v1054 = vunpack.c.l.bf16 %v542
    %v1055 = vunpack.c.l.bf16 %v543
    %v1056 = vunpack.c.l.bf16 %v544
    %v1057 = vunpack.c.l.bf16 %v545
    %v1058 = vunpack.c.l.bf16 %v546
    %v1059 = vunpack.c.l.bf16 %v547
    %v1060 = vunpack.c.l.bf16 %v548
    %v1061 = vunpack.c.l.bf16 %v549
    %v1062 = vunpack.c.l.bf16 %v550
    %v1063 = vunpack.c.l.bf16 %v551
    %v1064 = vunpack.c.l.bf16 %v552
    %v1065 = vunpack.c.l.bf16 %v553
    %v1066 = vunpack.c.l.bf16 %v554
    %v1067 = vunpack.c.l.bf16 %v555
    %v1068 = vunpack.c.l.bf16 %v556
    %v1069 = vunpack.c.l.bf16 %v557
    %v1070 = vunpack.c.l.bf16 %v558
    %v1071 = vunpack.c.l.bf16 %v559
    %v1072 = vunpack.c.l.bf16 %v560
    %v1073 = vunpack.c.l.bf16 %v561
    %v1074 = vunpack.c.l.bf16 %v562
    %v1075 = vunpack.c.l.bf16 %v563
    %v1076 = vunpack.c.l.bf16 %v564
    %v1077 = vunpack.c.l.bf16 %v565
    %v1078 = vunpack.c.l.bf16 %v566
    %v1079 = vunpack.c.l.bf16 %v567
    %v1080 = vunpack.c.l.bf16 %v568
    %v1081 = vunpack.c.l.bf16 %v569
    %v1082 = vunpack.c.l.bf16 %v570
    %v1083 = vunpack.c.l.bf16 %v571
    %v1084 = vunpack.c.l.bf16 %v572
    %v1085 = vunpack.c.l.bf16 %v573
    %v1086 = vunpack.c.l.bf16 %v574
    %v1087 = vunpack.c.l.bf16 %v575
    %v1088 = vunpack.c.l.bf16 %v576
    %v1089 = vunpack.c.l.bf16 %v577
    %v1090 = vunpack.c.l.bf16 %v578
    %v1091 = vunpack.c.l.bf16 %v579
    %v1092 = vunpack.c.l.bf16 %v580
    %v1093 = vunpack.c.l.bf16 %v581
    %v1094 = vunpack.c.l.bf16 %v582
    %v1095 = vunpack.c.l.bf16 %v583
    %v1096 = vunpack.c.l.bf16 %v584
    %v1097 = vunpack.c.l.bf16 %v585
    %v1098 = vunpack.c.l.bf16 %v586
    %v1099 = vunpack.c.l.bf16 %v587
    %v1100 = vunpack.c.l.bf16 %v588
    %v1101 = vunpack.c.l.bf16 %v589
    %v1102 = vunpack.c.l.bf16 %v590
    %v1103 = vunpack.c.l.bf16 %v591
    %v1104 = vunpack.c.l.bf16 %v592
    %v1105 = vunpack.c.l.bf16 %v593
    %v1106 = vunpack.c.l.bf16 %v594
    %v1107 = vunpack.c.l.bf16 %v595
    %v1108 = vunpack.c.l.bf16 %v596
    %v1109 = vunpack.c.l.bf16 %v597
    %v1110 = vunpack.c.l.bf16 %v598
    %v1111 = vunpack.c.l.bf16 %v599
    %v1112 = vunpack.c.l.bf16 %v600
    %v1113 = vunpack.c.l.bf16 %v601
    %v1114 = vunpack.c.l.bf16 %v602
    %v1115 = vunpack.c.l.bf16 %v603
    %v1116 = vunpack.c.l.bf16 %v604
    %v1117 = vunpack.c.l.bf16 %v605
    %v1118 = vunpack.c.l.bf16 %v606
    %v1119 = vunpack.c.l.bf16 %v607
    %v1120 = vunpack.c.l.bf16 %v608
    %v1121 = vunpack.c.l.bf16 %v609
    %v1122 = vunpack.c.l.bf16 %v610
    %v1123 = vunpack.c.l.bf16 %v611
    %v1124 = vunpack.c.l.bf16 %v612
    %v1125 = vunpack.c.l.bf16 %v613
    %v1126 = vunpack.c.l.bf16 %v614
    %v1127 = vunpack.c.l.bf16 %v615
    %v1128 = vunpack.c.l.bf16 %v616
    %v1129 = vunpack.c.l.bf16 %v617
    %v1130 = vunpack.c.l.bf16 %v618
    %v1131 = vunpack.c.l.bf16 %v619
    %v1132 = vunpack.c.l.bf16 %v620
    %v1133 = vunpack.c.l.bf16 %v621
    %v1134 = vunpack.c.l.bf16 %v622
    %v1135 = vunpack.c.l.bf16 %v623
    %v1136 = vunpack.c.l.bf16 %v624
    %v1137 = vunpack.c.l.bf16 %v625
    %v1138 = vunpack.c.l.bf16 %v626
    %v1139 = vunpack.c.l.bf16 %v627
    %v1140 = vunpack.c.l.bf16 %v628
    %v1141 = vunpack.c.l.bf16 %v629
    %v1142 = vunpack.c.l.bf16 %v630
    %v1143 = vunpack.c.l.bf16 %v631
    %v1144 = vunpack.c.l.bf16 %v632
    %v1145 = vunpack.c.l.bf16 %v633
    %v1146 = vunpack.c.l.bf16 %v634
    %v1147 = vunpack.c.l.bf16 %v635
    %v1148 = vunpack.c.l.bf16 %v636
    %v1149 = vunpack.c.l.bf16 %v637
    %v1150 = vunpack.c.l.bf16 %v638
    %v1151 = vunpack.c.l.bf16 %v639
    %v1152 = vunpack.c.l.bf16 %v640
    %v1153 = vunpack.c.l.bf16 %v641
    %v1154 = vunpack.c.l.bf16 %v642
    %v1155 = vunpack.c.l.bf16 %v643
    %v1156 = vunpack.c.l.bf16 %v644
    %v1157 = vunpack.c.l.bf16 %v645
    %v1158 = vunpack.c.l.bf16 %v646
    %v1159 = vunpack.c.l.bf16 %v647
    %v1160 = vunpack.c.l.bf16 %v648
    %v1161 = vunpack.c.l.bf16 %v649
    %v1162 = vunpack.c.l.bf16 %v650
    %v1163 = vunpack.c.l.bf16 %v651
    %v1164 = vunpack.c.l.bf16 %v652
    %v1165 = vunpack.c.l.bf16 %v653
    %v1166 = vunpack.c.l.bf16 %v654
    %v1167 = vunpack.c.l.bf16 %v655
    %v1168 = vunpack.c.l.bf16 %v656
    %v1169 = vunpack.c.l.bf16 %v657
    %v1170 = vunpack.c.l.bf16 %v658
    %v1171 = vunpack.c.l.bf16 %v659
    %v1172 = vunpack.c.l.bf16 %v660
    %v1173 = vunpack.c.l.bf16 %v661
    %v1174 = vunpack.c.l.bf16 %v662
    %v1175 = vunpack.c.l.bf16 %v663
    %v1176 = vunpack.c.l.bf16 %v664
    %v1177 = vunpack.c.l.bf16 %v665
    %v1178 = vunpack.c.l.bf16 %v666
    %v1179 = vunpack.c.l.bf16 %v667
    %v1180 = vunpack.c.l.bf16 %v668
    %v1181 = vunpack.c.l.bf16 %v669
    %v1182 = vunpack.c.l.bf16 %v670
    %v1183 = vunpack.c.l.bf16 %v671
    %v1184 = vunpack.c.l.bf16 %v672
    %v1185 = vunpack.c.l.bf16 %v673
    %v1186 = vunpack.c.l.bf16 %v674
    %v1187 = vunpack.c.l.bf16 %v675
    %v1188 = vunpack.c.l.bf16 %v676
    %v1189 = vunpack.c.l.bf16 %v677
    %v1190 = vunpack.c.l.bf16 %v678
    %v1191 = vunpack.c.l.bf16 %v679
    %v1192 = vunpack.c.l.bf16 %v680
    %v1193 = vunpack.c.l.bf16 %v681
    %v1194 = vunpack.c.l.bf16 %v682
    %v1195 = vunpack.c.l.bf16 %v683
    %v1196 = vunpack.c.l.bf16 %v684
    %v1197 = vunpack.c.l.bf16 %v685
    %v1198 = vunpack.c.l.bf16 %v686
    %v1199 = vunpack.c.l.bf16 %v687
    %v1200 = vunpack.c.l.bf16 %v688
    %v1201 = vunpack.c.l.bf16 %v689
    %v1202 = vunpack.c.l.bf16 %v690
    %v1203 = vunpack.c.l.bf16 %v691
    %v1204 = vunpack.c.l.bf16 %v692
    %v1205 = vunpack.c.l.bf16 %v693
    %v1206 = vunpack.c.l.bf16 %v694
    %v1207 = vunpack.c.l.bf16 %v695
    %v1208 = vunpack.c.l.bf16 %v696
    %v1209 = vunpack.c.l.bf16 %v697
    %v1210 = vunpack.c.l.bf16 %v698
    %v1211 = vunpack.c.l.bf16 %v699
    %v1212 = vunpack.c.l.bf16 %v700
    %v1213 = vunpack.c.l.bf16 %v701
    %v1214 = vunpack.c.l.bf16 %v702
    %v1215 = vunpack.c.l.bf16 %v703
    %v1216 = vunpack.c.l.bf16 %v704
    %v1217 = vunpack.c.l.bf16 %v705
    %v1218 = vunpack.c.l.bf16 %v706
    %v1219 = vunpack.c.l.bf16 %v707
    %v1220 = vunpack.c.l.bf16 %v708
    %v1221 = vunpack.c.l.bf16 %v709
    %v1222 = vunpack.c.l.bf16 %v710
    %v1223 = vunpack.c.l.bf16 %v711
    %v1224 = vunpack.c.l.bf16 %v712
    %v1225 = vunpack.c.l.bf16 %v713
    %v1226 = vunpack.c.l.bf16 %v714
    %v1227 = vunpack.c.l.bf16 %v715
    %v1228 = vunpack.c.l.bf16 %v716
    %v1229 = vunpack.c.l.bf16 %v717
    %v1230 = vunpack.c.l.bf16 %v718
    %v1231 = vunpack.c.l.bf16 %v719
    %v1232 = vunpack.c.l.bf16 %v720
    %v1233 = vunpack.c.l.bf16 %v721
    %v1234 = vunpack.c.l.bf16 %v722
    %v1235 = vunpack.c.l.bf16 %v723
    %v1236 = vunpack.c.l.bf16 %v724
    %v1237 = vunpack.c.l.bf16 %v725
    %v1238 = vunpack.c.l.bf16 %v726
    %v1239 = vunpack.c.l.bf16 %v727
    %v1240 = vunpack.c.l.bf16 %v728
    %v1241 = vunpack.c.l.bf16 %v729
    %v1242 = vunpack.c.l.bf16 %v730
    %v1243 = vunpack.c.l.bf16 %v731
    %v1244 = vunpack.c.l.bf16 %v732
    %v1245 = vunpack.c.l.bf16 %v733
    %v1246 = vunpack.c.l.bf16 %v734
    %v1247 = vunpack.c.l.bf16 %v735
    %v1248 = vunpack.c.l.bf16 %v736
    %v1249 = vunpack.c.l.bf16 %v737
    %v1250 = vunpack.c.l.bf16 %v738
    %v1251 = vunpack.c.l.bf16 %v739
    %v1252 = vunpack.c.l.bf16 %v740
    %v1253 = vunpack.c.l.bf16 %v741
    %v1254 = vunpack.c.l.bf16 %v742
    %v1255 = vunpack.c.l.bf16 %v743
    %v1256 = vunpack.c.l.bf16 %v744
    %v1257 = vunpack.c.l.bf16 %v745
    %v1258 = vunpack.c.l.bf16 %v746
    %v1259 = vunpack.c.l.bf16 %v747
    %v1260 = vunpack.c.l.bf16 %v748
    %v1261 = vunpack.c.l.bf16 %v749
    %v1262 = vunpack.c.l.bf16 %v750
    %v1263 = vunpack.c.l.bf16 %v751
    %v1264 = vunpack.c.l.bf16 %v752
    %v1265 = vunpack.c.l.bf16 %v753
    %v1266 = vunpack.c.l.bf16 %v754
    %v1267 = vunpack.c.l.bf16 %v755
    %v1268 = vunpack.c.l.bf16 %v756
    %v1269 = vunpack.c.l.bf16 %v757
    %v1270 = vunpack.c.l.bf16 %v758
    %v1271 = vunpack.c.l.bf16 %v759
    %v1272 = vunpack.c.l.bf16 %v760
    %v1273 = vunpack.c.l.bf16 %v761
    %v1274 = vunpack.c.l.bf16 %v762
    %v1275 = vunpack.c.l.bf16 %v763
    %v1276 = vunpack.c.l.bf16 %v764
    %v1277 = vunpack.c.l.bf16 %v765
    %v1278 = vunpack.c.l.bf16 %v766
    %v1279 = vunpack.c.l.bf16 %v767
    %v1280 = vunpack.c.l.bf16 %v768
    %v1281 = vunpack.c.l.bf16 %v769
    %v1282 = vunpack.c.l.bf16 %v770
    %v1283 = vunpack.c.l.bf16 %v771
    %v1284 = vunpack.c.l.bf16 %v772
    %v1285 = vunpack.c.l.bf16 %v773
    %v1286 = vunpack.c.l.bf16 %v774
    %v1287 = vunpack.c.l.bf16 %v775
    %v1288 = vunpack.c.l.bf16 %v776
    %v1289 = vunpack.c.l.bf16 %v777
    %v1290 = vunpack.c.l.bf16 %v778
    %v1291 = vunpack.c.l.bf16 %v779
    %v1292 = vunpack.c.l.bf16 %v780
    %v1293 = vunpack.c.l.bf16 %v781
    %v1294 = vunpack.c.l.bf16 %v782
    %v1295 = vunpack.c.l.bf16 %v783
    %v1296 = vunpack.c.l.bf16 %v784
    %v1297 = vunpack.c.l.bf16 %v785
    %v1298 = vunpack.c.l.bf16 %v786
    %v1299 = vunpack.c.l.bf16 %v787
    %v1300 = vunpack.c.l.bf16 %v788
    %v1301 = vunpack.c.l.bf16 %v789
    %v1302 = vunpack.c.l.bf16 %v790
    %v1303 = vunpack.c.l.bf16 %v791
    %v1304 = vunpack.c.l.bf16 %v792
    %v1305 = vunpack.c.l.bf16 %v793
    %v1306 = vunpack.c.l.bf16 %v794
    %v1307 = vunpack.c.l.bf16 %v795
    %v1308 = vunpack.c.l.bf16 %v796
    %v1309 = vunpack.c.l.bf16 %v797
    %v1310 = vunpack.c.l.bf16 %v798
    %v1311 = vunpack.c.l.bf16 %v799
    %v1312 = vunpack.c.l.bf16 %v800
    %v1313 = vunpack.c.l.bf16 %v801
    %v1314 = vunpack.c.l.bf16 %v802
    %v1315 = vunpack.c.l.bf16 %v803
    %v1316 = vunpack.c.l.bf16 %v804
    %v1317 = vunpack.c.l.bf16 %v805
    %v1318 = vunpack.c.l.bf16 %v806
    %v1319 = vunpack.c.l.bf16 %v807
    %v1320 = vunpack.c.l.bf16 %v808
    %v1321 = vunpack.c.l.bf16 %v809
    %v1322 = vunpack.c.l.bf16 %v810
    %v1323 = vunpack.c.l.bf16 %v811
    %v1324 = vunpack.c.l.bf16 %v812
    %v1325 = vunpack.c.l.bf16 %v813
    %v1326 = vunpack.c.l.bf16 %v814
    %v1327 = vunpack.c.l.bf16 %v815
    %v1328 = vunpack.c.l.bf16 %v816
    %v1329 = vunpack.c.l.bf16 %v817
    %v1330 = vunpack.c.l.bf16 %v818
    %v1331 = vunpack.c.l.bf16 %v819
    %v1332 = vunpack.c.l.bf16 %v820
    %v1333 = vunpack.c.l.bf16 %v821
    %v1334 = vunpack.c.l.bf16 %v822
    %v1335 = vunpack.c.l.bf16 %v823
    %v1336 = vunpack.c.l.bf16 %v824
    %v1337 = vunpack.c.l.bf16 %v825
    %v1338 = vunpack.c.l.bf16 %v826
    %v1339 = vunpack.c.l.bf16 %v827
    %v1340 = vunpack.c.l.bf16 %v828
    %v1341 = vunpack.c.l.bf16 %v829
    %v1342 = vunpack.c.l.bf16 %v830
    %v1343 = vunpack.c.l.bf16 %v831
    %v1344 = vunpack.c.l.bf16 %v832
    %v1345 = vunpack.c.l.bf16 %v833
    %v1346 = vunpack.c.l.bf16 %v834
    %v1347 = vunpack.c.l.bf16 %v835
    %v1348 = vunpack.c.l.bf16 %v836
    %v1349 = vunpack.c.l.bf16 %v837
    %v1350 = vunpack.c.l.bf16 %v838
    %v1351 = vunpack.c.l.bf16 %v839
    %v1352 = vunpack.c.l.bf16 %v840
    %v1353 = vunpack.c.l.bf16 %v841
    %v1354 = vunpack.c.l.bf16 %v842
    %v1355 = vunpack.c.l.bf16 %v843
    %v1356 = vunpack.c.l.bf16 %v844
    %v1357 = vunpack.c.l.bf16 %v845
    %v1358 = vunpack.c.l.bf16 %v846
    %v1359 = vunpack.c.l.bf16 %v847
    %v1360 = vunpack.c.l.bf16 %v848
    %v1361 = vunpack.c.l.bf16 %v849
    %v1362 = vunpack.c.l.bf16 %v850
    %v1363 = vunpack.c.l.bf16 %v851
    %v1364 = vunpack.c.l.bf16 %v852
    %v1365 = vunpack.c.l.bf16 %v853
    %v1366 = vunpack.c.l.bf16 %v854
    %v1367 = vunpack.c.l.bf16 %v855
    %v1368 = vunpack.c.l.bf16 %v856
    %v1369 = vunpack.c.l.bf16 %v857
    %v1370 = vunpack.c.l.bf16 %v858
    %v1371 = vunpack.c.l.bf16 %v859
    %v1372 = vunpack.c.l.bf16 %v860
    %v1373 = vunpack.c.l.bf16 %v861
    %v1374 = vunpack.c.l.bf16 %v862
    %1391 = vst [vmem:[#allocation1] ss:$2 sm:$0xff] %v335
    %s1392 = scalar_lea.vmem [#allocation1], 16
    %1393 = vst [vmem:[%s1392] ss:$2 sm:$0xff] %v336
    %s1394 = scalar_lea.vmem [#allocation1], 32
    %1395 = vst [vmem:[%s1394] ss:$2 sm:$0xff] %v337
    %s1396 = scalar_lea.vmem [#allocation1], 48
    %1397 = vst [vmem:[%s1396] ss:$2 sm:$0xff] %v338
    %v1398 = vld.sshfl [vmem:[#allocation1] sm:$0xff pattern:$0x75316420]
    %v1399 = vld.sshfl [vmem:[#allocation1 + $0x8] sm:$0xff pattern:$0x75316420]
    %v1400 = vld.sshfl [vmem:[#allocation1 + $0x10] sm:$0xff pattern:$0x75316420]
    %v1401 = vld.sshfl [vmem:[#allocation1 + $0x18] sm:$0xff pattern:$0x75316420]
    %v1402 = vld.sshfl [vmem:[#allocation1 + $0x20] sm:$0xff pattern:$0x75316420]
    %v1403 = vld.sshfl [vmem:[#allocation1 + $0x28] sm:$0xff pattern:$0x75316420]
    %v1404 = vld.sshfl [vmem:[#allocation1 + $0x30] sm:$0xff pattern:$0x75316420]
    %v1405 = vld.sshfl [vmem:[#allocation1 + $0x38] sm:$0xff pattern:$0x75316420]
    %1406 = vst [vmem:[#allocation1] ss:$2 sm:$0xff] %v339
    %1407 = vst [vmem:[%s1392] ss:$2 sm:$0xff] %v340
    %1408 = vst [vmem:[%s1394] ss:$2 sm:$0xff] %v341
    %1409 = vst [vmem:[%s1396] ss:$2 sm:$0xff] %v342
    %v1410 = vld.sshfl [vmem:[#allocation1] sm:$0xff pattern:$0x75316420]
    %v1411 = vld.sshfl [vmem:[#allocation1 + $0x8] sm:$0xff pattern:$0x75316420]
    %v1412 = vld.sshfl [vmem:[#allocation1 + $0x10] sm:$0xff pattern:$0x75316420]
    %v1413 = vld.sshfl [vmem:[#allocation1 + $0x18] sm:$0xff pattern:$0x75316420]
    %v1414 = vld.sshfl [vmem:[#allocation1 + $0x20] sm:$0xff pattern:$0x75316420]
    %v1415 = vld.sshfl [vmem:[#allocation1 + $0x28] sm:$0xff pattern:$0x75316420]
    %v1416 = vld.sshfl [vmem:[#allocation1 + $0x30] sm:$0xff pattern:$0x75316420]
    %v1417 = vld.sshfl [vmem:[#allocation1 + $0x38] sm:$0xff pattern:$0x75316420]
    %1418 = vst [vmem:[#allocation1] ss:$2 sm:$0xff] %v343
    %1419 = vst [vmem:[%s1392] ss:$2 sm:$0xff] %v344
    %1420 = vst [vmem:[%s1394] ss:$2 sm:$0xff] %v345
    %1421 = vst [vmem:[%s1396] ss:$2 sm:$0xff] %v346
    %v1422 = vld.sshfl [vmem:[#allocation1] sm:$0xff pattern:$0x75316420]
    %v1423 = vld.sshfl [vmem:[#allocation1 + $0x8] sm:$0xff pattern:$0x75316420]
    %v1424 = vld.sshfl [vmem:[#allocation1 + $0x10] sm:$0xff pattern:$0x75316420]
    %v1425 = vld.sshfl [vmem:[#allocation1 + $0x18] sm:$0xff pattern:$0x75316420]
    %v1426 = vld.sshfl [vmem:[#allocation1 + $0x20] sm:$0xff pattern:$0x75316420]
    %v1427 = vld.sshfl [vmem:[#allocation1 + $0x28] sm:$0xff pattern:$0x75316420]
    %v1428 = vld.sshfl [vmem:[#allocation1 + $0x30] sm:$0xff pattern:$0x75316420]
    %v1429 = vld.sshfl [vmem:[#allocation1 + $0x38] sm:$0xff pattern:$0x75316420]
    %1430 = vst [vmem:[#allocation1] ss:$2 sm:$0xff] %v347
    %1431 = vst [vmem:[%s1392] ss:$2 sm:$0xff] %v348
    %1432 = vst [vmem:[%s1394] ss:$2 sm:$0xff] %v349
    %1433 = vst [vmem:[%s1396] ss:$2 sm:$0xff] %v350
    %v1434 = vld.sshfl [vmem:[#allocation1] sm:$0xff pattern:$0x75316420]
    %v1435 = vld.sshfl [vmem:[#allocation1 + $0x8] sm:$0xff pattern:$0x75316420]
    %v1436 = vld.sshfl [vmem:[#allocation1 + $0x10] sm:$0xff pattern:$0x75316420]
    %v1437 = vld.sshfl [vmem:[#allocation1 + $0x18] sm:$0xff pattern:$0x75316420]
    %v1438 = vld.sshfl [vmem:[#allocation1 + $0x20] sm:$0xff pattern:$0x75316420]
    %v1439 = vld.sshfl [vmem:[#allocation1 + $0x28] sm:$0xff pattern:$0x75316420]
    %v1440 = vld.sshfl [vmem:[#allocation1 + $0x30] sm:$0xff pattern:$0x75316420]
    %v1441 = vld.sshfl [vmem:[#allocation1 + $0x38] sm:$0xff pattern:$0x75316420]
    %1474 = vmatpush.msra.mxu0 %v878
    %1475 = vmatpush.msra.mxu0 %v877
    %1476 = vmatpush.msra.mxu0 %v876
    %1477 = vmatpush.msra.mxu0 %v875
    %1478 = vmatpush.msra.mxu0 %v874
    %1479 = vmatpush.msra.mxu0 %v873
    %1480 = vmatpush.msra.mxu0 %v872
    %1481 = vmatpush.msra.mxu0 %v871
    %1482 = vmatpush.msra.mxu0 %v870
    %1483 = vmatpush.msra.mxu0 %v869
    %1484 = vmatpush.msra.mxu0 %v868
    %1485 = vmatpush.msra.mxu0 %v867
    %1486 = vmatpush.msra.mxu0 %v866
    %1487 = vmatpush.msra.mxu0 %v865
    %1488 = vmatpush.msra.mxu0 %v864
    %1489 = vmatpush.msra.mxu0 %v863
    %1490 = vmatmul.f32.gmra.mxu0 %v1398
    %v1491 = vpop.f32.mrf.mxu0
    %v1492 = vadd.f32 0.0, %v1491
    %1493 = vdwg.mxu0
    %1494 = vmatpush.msra.mxu0 %v894
    %1495 = vmatpush.msra.mxu0 %v893
    %1496 = vmatpush.msra.mxu0 %v892
    %1497 = vmatpush.msra.mxu0 %v891
    %1498 = vmatpush.msra.mxu0 %v890
    %1499 = vmatpush.msra.mxu0 %v889
    %1500 = vmatpush.msra.mxu0 %v888
    %1501 = vmatpush.msra.mxu0 %v887
    %1502 = vmatpush.msra.mxu0 %v886
    %1503 = vmatpush.msra.mxu0 %v885
    %1504 = vmatpush.msra.mxu0 %v884
    %1505 = vmatpush.msra.mxu0 %v883
    %1506 = vmatpush.msra.mxu0 %v882
    %1507 = vmatpush.msra.mxu0 %v881
    %1508 = vmatpush.msra.mxu0 %v880
    %1509 = vmatpush.msra.mxu0 %v879
    %1510 = vmatmul.f32.gmra.mxu0 %v1399
    %v1511 = vpop.f32.mrf.mxu0
    %v1512 = vadd.f32 %v1492, %v1511
    %1513 = vdwg.mxu0
    %1514 = vmatpush.msra.mxu0 %v910
    %1515 = vmatpush.msra.mxu0 %v909
    %1516 = vmatpush.msra.mxu0 %v908
    %1517 = vmatpush.msra.mxu0 %v907
    %1518 = vmatpush.msra.mxu0 %v906
    %1519 = vmatpush.msra.mxu0 %v905
    %1520 = vmatpush.msra.mxu0 %v904
    %1521 = vmatpush.msra.mxu0 %v903
    %1522 = vmatpush.msra.mxu0 %v902
    %1523 = vmatpush.msra.mxu0 %v901
    %1524 = vmatpush.msra.mxu0 %v900
    %1525 = vmatpush.msra.mxu0 %v899
    %1526 = vmatpush.msra.mxu0 %v898
    %1527 = vmatpush.msra.mxu0 %v897
    %1528 = vmatpush.msra.mxu0 %v896
    %1529 = vmatpush.msra.mxu0 %v895
    %1530 = vmatmul.f32.gmra.mxu0 %v1400
    %v1531 = vpop.f32.mrf.mxu0
    %v1532 = vadd.f32 %v1512, %v1531
    %1533 = vdwg.mxu0
    %1534 = vmatpush.msra.mxu0 %v926
    %1535 = vmatpush.msra.mxu0 %v925
    %1536 = vmatpush.msra.mxu0 %v924
    %1537 = vmatpush.msra.mxu0 %v923
    %1538 = vmatpush.msra.mxu0 %v922
    %1539 = vmatpush.msra.mxu0 %v921
    %1540 = vmatpush.msra.mxu0 %v920
    %1541 = vmatpush.msra.mxu0 %v919
    %1542 = vmatpush.msra.mxu0 %v918
    %1543 = vmatpush.msra.mxu0 %v917
    %1544 = vmatpush.msra.mxu0 %v916
    %1545 = vmatpush.msra.mxu0 %v915
    %1546 = vmatpush.msra.mxu0 %v914
    %1547 = vmatpush.msra.mxu0 %v913
    %1548 = vmatpush.msra.mxu0 %v912
    %1549 = vmatpush.msra.mxu0 %v911
    %1550 = vmatmul.f32.gmra.mxu0 %v1401
    %v1551 = vpop.f32.mrf.mxu0
    %v1552 = vadd.f32 %v1532, %v1551
    %1553 = vdwg.mxu0
    %1554 = vmatpush.msra.mxu0 %v942
    %1555 = vmatpush.msra.mxu0 %v941
    %1556 = vmatpush.msra.mxu0 %v940
    %1557 = vmatpush.msra.mxu0 %v939
    %1558 = vmatpush.msra.mxu0 %v938
    %1559 = vmatpush.msra.mxu0 %v937
    %1560 = vmatpush.msra.mxu0 %v936
    %1561 = vmatpush.msra.mxu0 %v935
    %1562 = vmatpush.msra.mxu0 %v934
    %1563 = vmatpush.msra.mxu0 %v933
    %1564 = vmatpush.msra.mxu0 %v932
    %1565 = vmatpush.msra.mxu0 %v931
    %1566 = vmatpush.msra.mxu0 %v930
    %1567 = vmatpush.msra.mxu0 %v929
    %1568 = vmatpush.msra.mxu0 %v928
    %1569 = vmatpush.msra.mxu0 %v927
    %1570 = vmatmul.f32.gmra.mxu0 %v1402
    %v1571 = vpop.f32.mrf.mxu0
    %v1572 = vadd.f32 %v1552, %v1571
    %1573 = vdwg.mxu0
    %1574 = vmatpush.msra.mxu0 %v958
    %1575 = vmatpush.msra.mxu0 %v957
    %1576 = vmatpush.msra.mxu0 %v956
    %1577 = vmatpush.msra.mxu0 %v955
    %1578 = vmatpush.msra.mxu0 %v954
    %1579 = vmatpush.msra.mxu0 %v953
    %1580 = vmatpush.msra.mxu0 %v952
    %1581 = vmatpush.msra.mxu0 %v951
    %1582 = vmatpush.msra.mxu0 %v950
    %1583 = vmatpush.msra.mxu0 %v949
    %1584 = vmatpush.msra.mxu0 %v948
    %1585 = vmatpush.msra.mxu0 %v947
    %1586 = vmatpush.msra.mxu0 %v946
    %1587 = vmatpush.msra.mxu0 %v945
    %1588 = vmatpush.msra.mxu0 %v944
    %1589 = vmatpush.msra.mxu0 %v943
    %1590 = vmatmul.f32.gmra.mxu0 %v1403
    %v1591 = vpop.f32.mrf.mxu0
    %v1592 = vadd.f32 %v1572, %v1591
    %1593 = vdwg.mxu0
    %1594 = vmatpush.msra.mxu0 %v974
    %1595 = vmatpush.msra.mxu0 %v973
    %1596 = vmatpush.msra.mxu0 %v972
    %1597 = vmatpush.msra.mxu0 %v971
    %1598 = vmatpush.msra.mxu0 %v970
    %1599 = vmatpush.msra.mxu0 %v969
    %1600 = vmatpush.msra.mxu0 %v968
    %1601 = vmatpush.msra.mxu0 %v967
    %1602 = vmatpush.msra.mxu0 %v966
    %1603 = vmatpush.msra.mxu0 %v965
    %1604 = vmatpush.msra.mxu0 %v964
    %1605 = vmatpush.msra.mxu0 %v963
    %1606 = vmatpush.msra.mxu0 %v962
    %1607 = vmatpush.msra.mxu0 %v961
    %1608 = vmatpush.msra.mxu0 %v960
    %1609 = vmatpush.msra.mxu0 %v959
    %1610 = vmatmul.f32.gmra.mxu0 %v1404
    %v1611 = vpop.f32.mrf.mxu0
    %v1612 = vadd.f32 %v1592, %v1611
    %1613 = vdwg.mxu0
    %1614 = vmatpush.msra.mxu0 %v990
    %1615 = vmatpush.msra.mxu0 %v989
    %1616 = vmatpush.msra.mxu0 %v988
    %1617 = vmatpush.msra.mxu0 %v987
    %1618 = vmatpush.msra.mxu0 %v986
    %1619 = vmatpush.msra.mxu0 %v985
    %1620 = vmatpush.msra.mxu0 %v984
    %1621 = vmatpush.msra.mxu0 %v983
    %1622 = vmatpush.msra.mxu0 %v982
    %1623 = vmatpush.msra.mxu0 %v981
    %1624 = vmatpush.msra.mxu0 %v980
    %1625 = vmatpush.msra.mxu0 %v979
    %1626 = vmatpush.msra.mxu0 %v978
    %1627 = vmatpush.msra.mxu0 %v977
    %1628 = vmatpush.msra.mxu0 %v976
    %1629 = vmatpush.msra.mxu0 %v975
    %1630 = vmatmul.f32.gmra.mxu0 %v1405
    %v1631 = vpop.f32.mrf.mxu0
    %v1632 = vadd.f32 %v1612, %v1631
    %1633 = vdwg.mxu0
    %1634 = vmatpush.msra.mxu0 %v1006
    %1635 = vmatpush.msra.mxu0 %v1005
    %1636 = vmatpush.msra.mxu0 %v1004
    %1637 = vmatpush.msra.mxu0 %v1003
    %1638 = vmatpush.msra.mxu0 %v1002
    %1639 = vmatpush.msra.mxu0 %v1001
    %1640 = vmatpush.msra.mxu0 %v1000
    %1641 = vmatpush.msra.mxu0 %v999
    %1642 = vmatpush.msra.mxu0 %v998
    %1643 = vmatpush.msra.mxu0 %v997
    %1644 = vmatpush.msra.mxu0 %v996
    %1645 = vmatpush.msra.mxu0 %v995
    %1646 = vmatpush.msra.mxu0 %v994
    %1647 = vmatpush.msra.mxu0 %v993
    %1648 = vmatpush.msra.mxu0 %v992
    %1649 = vmatpush.msra.mxu0 %v991
    %1650 = vmatmul.f32.gmra.mxu0 %v1410
    %v1651 = vpop.f32.mrf.mxu0
    %v1652 = vadd.f32 %v1632, %v1651
    %1653 = vdwg.mxu0
    %1654 = vmatpush.msra.mxu0 %v1022
    %1655 = vmatpush.msra.mxu0 %v1021
    %1656 = vmatpush.msra.mxu0 %v1020
    %1657 = vmatpush.msra.mxu0 %v1019
    %1658 = vmatpush.msra.mxu0 %v1018
    %1659 = vmatpush.msra.mxu0 %v1017
    %1660 = vmatpush.msra.mxu0 %v1016
    %1661 = vmatpush.msra.mxu0 %v1015
    %1662 = vmatpush.msra.mxu0 %v1014
    %1663 = vmatpush.msra.mxu0 %v1013
    %1664 = vmatpush.msra.mxu0 %v1012
    %1665 = vmatpush.msra.mxu0 %v1011
    %1666 = vmatpush.msra.mxu0 %v1010
    %1667 = vmatpush.msra.mxu0 %v1009
    %1668 = vmatpush.msra.mxu0 %v1008
    %1669 = vmatpush.msra.mxu0 %v1007
    %1670 = vmatmul.f32.gmra.mxu0 %v1411
    %v1671 = vpop.f32.mrf.mxu0
    %v1672 = vadd.f32 %v1652, %v1671
    %1673 = vdwg.mxu0
    %1674 = vmatpush.msra.mxu0 %v1038
    %1675 = vmatpush.msra.mxu0 %v1037
    %1676 = vmatpush.msra.mxu0 %v1036
    %1677 = vmatpush.msra.mxu0 %v1035
    %1678 = vmatpush.msra.mxu0 %v1034
    %1679 = vmatpush.msra.mxu0 %v1033
    %1680 = vmatpush.msra.mxu0 %v1032
    %1681 = vmatpush.msra.mxu0 %v1031
    %1682 = vmatpush.msra.mxu0 %v1030
    %1683 = vmatpush.msra.mxu0 %v1029
    %1684 = vmatpush.msra.mxu0 %v1028
    %1685 = vmatpush.msra.mxu0 %v1027
    %1686 = vmatpush.msra.mxu0 %v1026
    %1687 = vmatpush.msra.mxu0 %v1025
    %1688 = vmatpush.msra.mxu0 %v1024
    %1689 = vmatpush.msra.mxu0 %v1023
    %1690 = vmatmul.f32.gmra.mxu0 %v1412
    %v1691 = vpop.f32.mrf.mxu0
    %v1692 = vadd.f32 %v1672, %v1691
    %1693 = vdwg.mxu0
    %1694 = vmatpush.msra.mxu0 %v1054
    %1695 = vmatpush.msra.mxu0 %v1053
    %1696 = vmatpush.msra.mxu0 %v1052
    %1697 = vmatpush.msra.mxu0 %v1051
    %1698 = vmatpush.msra.mxu0 %v1050
    %1699 = vmatpush.msra.mxu0 %v1049
    %1700 = vmatpush.msra.mxu0 %v1048
    %1701 = vmatpush.msra.mxu0 %v1047
    %1702 = vmatpush.msra.mxu0 %v1046
    %1703 = vmatpush.msra.mxu0 %v1045
    %1704 = vmatpush.msra.mxu0 %v1044
    %1705 = vmatpush.msra.mxu0 %v1043
    %1706 = vmatpush.msra.mxu0 %v1042
    %1707 = vmatpush.msra.mxu0 %v1041
    %1708 = vmatpush.msra.mxu0 %v1040
    %1709 = vmatpush.msra.mxu0 %v1039
    %1710 = vmatmul.f32.gmra.mxu0 %v1413
    %v1711 = vpop.f32.mrf.mxu0
    %v1712 = vadd.f32 %v1692, %v1711
    %1713 = vdwg.mxu0
    %1714 = vmatpush.msra.mxu0 %v1070
    %1715 = vmatpush.msra.mxu0 %v1069
    %1716 = vmatpush.msra.mxu0 %v1068
    %1717 = vmatpush.msra.mxu0 %v1067
    %1718 = vmatpush.msra.mxu0 %v1066
    %1719 = vmatpush.msra.mxu0 %v1065
    %1720 = vmatpush.msra.mxu0 %v1064
    %1721 = vmatpush.msra.mxu0 %v1063
    %1722 = vmatpush.msra.mxu0 %v1062
    %1723 = vmatpush.msra.mxu0 %v1061
    %1724 = vmatpush.msra.mxu0 %v1060
    %1725 = vmatpush.msra.mxu0 %v1059
    %1726 = vmatpush.msra.mxu0 %v1058
    %1727 = vmatpush.msra.mxu0 %v1057
    %1728 = vmatpush.msra.mxu0 %v1056
    %1729 = vmatpush.msra.mxu0 %v1055
    %1730 = vmatmul.f32.gmra.mxu0 %v1414
    %v1731 = vpop.f32.mrf.mxu0
    %v1732 = vadd.f32 %v1712, %v1731
    %1733 = vdwg.mxu0
    %1734 = vmatpush.msra.mxu0 %v1086
    %1735 = vmatpush.msra.mxu0 %v1085
    %1736 = vmatpush.msra.mxu0 %v1084
    %1737 = vmatpush.msra.mxu0 %v1083
    %1738 = vmatpush.msra.mxu0 %v1082
    %1739 = vmatpush.msra.mxu0 %v1081
    %1740 = vmatpush.msra.mxu0 %v1080
    %1741 = vmatpush.msra.mxu0 %v1079
    %1742 = vmatpush.msra.mxu0 %v1078
    %1743 = vmatpush.msra.mxu0 %v1077
    %1744 = vmatpush.msra.mxu0 %v1076
    %1745 = vmatpush.msra.mxu0 %v1075
    %1746 = vmatpush.msra.mxu0 %v1074
    %1747 = vmatpush.msra.mxu0 %v1073
    %1748 = vmatpush.msra.mxu0 %v1072
    %1749 = vmatpush.msra.mxu0 %v1071
    %1750 = vmatmul.f32.gmra.mxu0 %v1415
    %v1751 = vpop.f32.mrf.mxu0
    %v1752 = vadd.f32 %v1732, %v1751
    %1753 = vdwg.mxu0
    %1754 = vmatpush.msra.mxu0 %v1102
    %1755 = vmatpush.msra.mxu0 %v1101
    %1756 = vmatpush.msra.mxu0 %v1100
    %1757 = vmatpush.msra.mxu0 %v1099
    %1758 = vmatpush.msra.mxu0 %v1098
    %1759 = vmatpush.msra.mxu0 %v1097
    %1760 = vmatpush.msra.mxu0 %v1096
    %1761 = vmatpush.msra.mxu0 %v1095
    %1762 = vmatpush.msra.mxu0 %v1094
    %1763 = vmatpush.msra.mxu0 %v1093
    %1764 = vmatpush.msra.mxu0 %v1092
    %1765 = vmatpush.msra.mxu0 %v1091
    %1766 = vmatpush.msra.mxu0 %v1090
    %1767 = vmatpush.msra.mxu0 %v1089
    %1768 = vmatpush.msra.mxu0 %v1088
    %1769 = vmatpush.msra.mxu0 %v1087
    %1770 = vmatmul.f32.gmra.mxu0 %v1416
    %v1771 = vpop.f32.mrf.mxu0
    %v1772 = vadd.f32 %v1752, %v1771
    %1773 = vdwg.mxu0
    %1774 = vmatpush.msra.mxu0 %v1118
    %1775 = vmatpush.msra.mxu0 %v1117
    %1776 = vmatpush.msra.mxu0 %v1116
    %1777 = vmatpush.msra.mxu0 %v1115
    %1778 = vmatpush.msra.mxu0 %v1114
    %1779 = vmatpush.msra.mxu0 %v1113
    %1780 = vmatpush.msra.mxu0 %v1112
    %1781 = vmatpush.msra.mxu0 %v1111
    %1782 = vmatpush.msra.mxu0 %v1110
    %1783 = vmatpush.msra.mxu0 %v1109
    %1784 = vmatpush.msra.mxu0 %v1108
    %1785 = vmatpush.msra.mxu0 %v1107
    %1786 = vmatpush.msra.mxu0 %v1106
    %1787 = vmatpush.msra.mxu0 %v1105
    %1788 = vmatpush.msra.mxu0 %v1104
    %1789 = vmatpush.msra.mxu0 %v1103
    %1790 = vmatmul.f32.gmra.mxu0 %v1417
    %v1791 = vpop.f32.mrf.mxu0
    %v1792 = vadd.f32 %v1772, %v1791
    %1793 = vdwg.mxu0
    %1794 = vmatpush.msra.mxu0 %v1134
    %1795 = vmatpush.msra.mxu0 %v1133
    %1796 = vmatpush.msra.mxu0 %v1132
    %1797 = vmatpush.msra.mxu0 %v1131
    %1798 = vmatpush.msra.mxu0 %v1130
    %1799 = vmatpush.msra.mxu0 %v1129
    %1800 = vmatpush.msra.mxu0 %v1128
    %1801 = vmatpush.msra.mxu0 %v1127
    %1802 = vmatpush.msra.mxu0 %v1126
    %1803 = vmatpush.msra.mxu0 %v1125
    %1804 = vmatpush.msra.mxu0 %v1124
    %1805 = vmatpush.msra.mxu0 %v1123
    %1806 = vmatpush.msra.mxu0 %v1122
    %1807 = vmatpush.msra.mxu0 %v1121
    %1808 = vmatpush.msra.mxu0 %v1120
    %1809 = vmatpush.msra.mxu0 %v1119
    %1810 = vmatmul.f32.gmra.mxu0 %v1422
    %v1811 = vpop.f32.mrf.mxu0
    %v1812 = vadd.f32 %v1792, %v1811
    %1813 = vdwg.mxu0
    %1814 = vmatpush.msra.mxu0 %v1150
    %1815 = vmatpush.msra.mxu0 %v1149
    %1816 = vmatpush.msra.mxu0 %v1148
    %1817 = vmatpush.msra.mxu0 %v1147
    %1818 = vmatpush.msra.mxu0 %v1146
    %1819 = vmatpush.msra.mxu0 %v1145
    %1820 = vmatpush.msra.mxu0 %v1144
    %1821 = vmatpush.msra.mxu0 %v1143
    %1822 = vmatpush.msra.mxu0 %v1142
    %1823 = vmatpush.msra.mxu0 %v1141
    %1824 = vmatpush.msra.mxu0 %v1140
    %1825 = vmatpush.msra.mxu0 %v1139
    %1826 = vmatpush.msra.mxu0 %v1138
    %1827 = vmatpush.msra.mxu0 %v1137
    %1828 = vmatpush.msra.mxu0 %v1136
    %1829 = vmatpush.msra.mxu0 %v1135
    %1830 = vmatmul.f32.gmra.mxu0 %v1423
    %v1831 = vpop.f32.mrf.mxu0
    %v1832 = vadd.f32 %v1812, %v1831
    %1833 = vdwg.mxu0
    %1834 = vmatpush.msra.mxu0 %v1166
    %1835 = vmatpush.msra.mxu0 %v1165
    %1836 = vmatpush.msra.mxu0 %v1164
    %1837 = vmatpush.msra.mxu0 %v1163
    %1838 = vmatpush.msra.mxu0 %v1162
    %1839 = vmatpush.msra.mxu0 %v1161
    %1840 = vmatpush.msra.mxu0 %v1160
    %1841 = vmatpush.msra.mxu0 %v1159
    %1842 = vmatpush.msra.mxu0 %v1158
    %1843 = vmatpush.msra.mxu0 %v1157
    %1844 = vmatpush.msra.mxu0 %v1156
    %1845 = vmatpush.msra.mxu0 %v1155
    %1846 = vmatpush.msra.mxu0 %v1154
    %1847 = vmatpush.msra.mxu0 %v1153
    %1848 = vmatpush.msra.mxu0 %v1152
    %1849 = vmatpush.msra.mxu0 %v1151
    %1850 = vmatmul.f32.gmra.mxu0 %v1424
    %v1851 = vpop.f32.mrf.mxu0
    %v1852 = vadd.f32 %v1832, %v1851
    %1853 = vdwg.mxu0
    %1854 = vmatpush.msra.mxu0 %v1182
    %1855 = vmatpush.msra.mxu0 %v1181
    %1856 = vmatpush.msra.mxu0 %v1180
    %1857 = vmatpush.msra.mxu0 %v1179
    %1858 = vmatpush.msra.mxu0 %v1178
    %1859 = vmatpush.msra.mxu0 %v1177
    %1860 = vmatpush.msra.mxu0 %v1176
    %1861 = vmatpush.msra.mxu0 %v1175
    %1862 = vmatpush.msra.mxu0 %v1174
    %1863 = vmatpush.msra.mxu0 %v1173
    %1864 = vmatpush.msra.mxu0 %v1172
    %1865 = vmatpush.msra.mxu0 %v1171
    %1866 = vmatpush.msra.mxu0 %v1170
    %1867 = vmatpush.msra.mxu0 %v1169
    %1868 = vmatpush.msra.mxu0 %v1168
    %1869 = vmatpush.msra.mxu0 %v1167
    %1870 = vmatmul.f32.gmra.mxu0 %v1425
    %v1871 = vpop.f32.mrf.mxu0
    %v1872 = vadd.f32 %v1852, %v1871
    %1873 = vdwg.mxu0
    %1874 = vmatpush.msra.mxu0 %v1198
    %1875 = vmatpush.msra.mxu0 %v1197
    %1876 = vmatpush.msra.mxu0 %v1196
    %1877 = vmatpush.msra.mxu0 %v1195
    %1878 = vmatpush.msra.mxu0 %v1194
    %1879 = vmatpush.msra.mxu0 %v1193
    %1880 = vmatpush.msra.mxu0 %v1192
    %1881 = vmatpush.msra.mxu0 %v1191
    %1882 = vmatpush.msra.mxu0 %v1190
    %1883 = vmatpush.msra.mxu0 %v1189
    %1884 = vmatpush.msra.mxu0 %v1188
    %1885 = vmatpush.msra.mxu0 %v1187
    %1886 = vmatpush.msra.mxu0 %v1186
    %1887 = vmatpush.msra.mxu0 %v1185
    %1888 = vmatpush.msra.mxu0 %v1184
    %1889 = vmatpush.msra.mxu0 %v1183
    %1890 = vmatmul.f32.gmra.mxu0 %v1426
    %v1891 = vpop.f32.mrf.mxu0
    %v1892 = vadd.f32 %v1872, %v1891
    %1893 = vdwg.mxu0
    %1894 = vmatpush.msra.mxu0 %v1214
    %1895 = vmatpush.msra.mxu0 %v1213
    %1896 = vmatpush.msra.mxu0 %v1212
    %1897 = vmatpush.msra.mxu0 %v1211
    %1898 = vmatpush.msra.mxu0 %v1210
    %1899 = vmatpush.msra.mxu0 %v1209
    %1900 = vmatpush.msra.mxu0 %v1208
    %1901 = vmatpush.msra.mxu0 %v1207
    %1902 = vmatpush.msra.mxu0 %v1206
    %1903 = vmatpush.msra.mxu0 %v1205
    %1904 = vmatpush.msra.mxu0 %v1204
    %1905 = vmatpush.msra.mxu0 %v1203
    %1906 = vmatpush.msra.mxu0 %v1202
    %1907 = vmatpush.msra.mxu0 %v1201
    %1908 = vmatpush.msra.mxu0 %v1200
    %1909 = vmatpush.msra.mxu0 %v1199
    %1910 = vmatmul.f32.gmra.mxu0 %v1427
    %v1911 = vpop.f32.mrf.mxu0
    %v1912 = vadd.f32 %v1892, %v1911
    %1913 = vdwg.mxu0
    %1914 = vmatpush.msra.mxu0 %v1230
    %1915 = vmatpush.msra.mxu0 %v1229
    %1916 = vmatpush.msra.mxu0 %v1228
    %1917 = vmatpush.msra.mxu0 %v1227
    %1918 = vmatpush.msra.mxu0 %v1226
    %1919 = vmatpush.msra.mxu0 %v1225
    %1920 = vmatpush.msra.mxu0 %v1224
    %1921 = vmatpush.msra.mxu0 %v1223
    %1922 = vmatpush.msra.mxu0 %v1222
    %1923 = vmatpush.msra.mxu0 %v1221
    %1924 = vmatpush.msra.mxu0 %v1220
    %1925 = vmatpush.msra.mxu0 %v1219
    %1926 = vmatpush.msra.mxu0 %v1218
    %1927 = vmatpush.msra.mxu0 %v1217
    %1928 = vmatpush.msra.mxu0 %v1216
    %1929 = vmatpush.msra.mxu0 %v1215
    %1930 = vmatmul.f32.gmra.mxu0 %v1428
    %v1931 = vpop.f32.mrf.mxu0
    %v1932 = vadd.f32 %v1912, %v1931
    %1933 = vdwg.mxu0
    %1934 = vmatpush.msra.mxu0 %v1246
    %1935 = vmatpush.msra.mxu0 %v1245
    %1936 = vmatpush.msra.mxu0 %v1244
    %1937 = vmatpush.msra.mxu0 %v1243
    %1938 = vmatpush.msra.mxu0 %v1242
    %1939 = vmatpush.msra.mxu0 %v1241
    %1940 = vmatpush.msra.mxu0 %v1240
    %1941 = vmatpush.msra.mxu0 %v1239
    %1942 = vmatpush.msra.mxu0 %v1238
    %1943 = vmatpush.msra.mxu0 %v1237
    %1944 = vmatpush.msra.mxu0 %v1236
    %1945 = vmatpush.msra.mxu0 %v1235
    %1946 = vmatpush.msra.mxu0 %v1234
    %1947 = vmatpush.msra.mxu0 %v1233
    %1948 = vmatpush.msra.mxu0 %v1232
    %1949 = vmatpush.msra.mxu0 %v1231
    %1950 = vmatmul.f32.gmra.mxu0 %v1429
    %v1951 = vpop.f32.mrf.mxu0
    %v1952 = vadd.f32 %v1932, %v1951
    %1953 = vdwg.mxu0
    %1954 = vmatpush.msra.mxu0 %v1262
    %1955 = vmatpush.msra.mxu0 %v1261
    %1956 = vmatpush.msra.mxu0 %v1260
    %1957 = vmatpush.msra.mxu0 %v1259
    %1958 = vmatpush.msra.mxu0 %v1258
    %1959 = vmatpush.msra.mxu0 %v1257
    %1960 = vmatpush.msra.mxu0 %v1256
    %1961 = vmatpush.msra.mxu0 %v1255
    %1962 = vmatpush.msra.mxu0 %v1254
    %1963 = vmatpush.msra.mxu0 %v1253
    %1964 = vmatpush.msra.mxu0 %v1252
    %1965 = vmatpush.msra.mxu0 %v1251
    %1966 = vmatpush.msra.mxu0 %v1250
    %1967 = vmatpush.msra.mxu0 %v1249
    %1968 = vmatpush.msra.mxu0 %v1248
    %1969 = vmatpush.msra.mxu0 %v1247
    %1970 = vmatmul.f32.gmra.mxu0 %v1434
    %v1971 = vpop.f32.mrf.mxu0
    %v1972 = vadd.f32 %v1952, %v1971
    %1973 = vdwg.mxu0
    %1974 = vmatpush.msra.mxu0 %v1278
    %1975 = vmatpush.msra.mxu0 %v1277
    %1976 = vmatpush.msra.mxu0 %v1276
    %1977 = vmatpush.msra.mxu0 %v1275
    %1978 = vmatpush.msra.mxu0 %v1274
    %1979 = vmatpush.msra.mxu0 %v1273
    %1980 = vmatpush.msra.mxu0 %v1272
    %1981 = vmatpush.msra.mxu0 %v1271
    %1982 = vmatpush.msra.mxu0 %v1270
    %1983 = vmatpush.msra.mxu0 %v1269
    %1984 = vmatpush.msra.mxu0 %v1268
    %1985 = vmatpush.msra.mxu0 %v1267
    %1986 = vmatpush.msra.mxu0 %v1266
    %1987 = vmatpush.msra.mxu0 %v1265
    %1988 = vmatpush.msra.mxu0 %v1264
    %1989 = vmatpush.msra.mxu0 %v1263
    %1990 = vmatmul.f32.gmra.mxu0 %v1435
    %v1991 = vpop.f32.mrf.mxu0
    %v1992 = vadd.f32 %v1972, %v1991
    %1993 = vdwg.mxu0
    %1994 = vmatpush.msra.mxu0 %v1294
    %1995 = vmatpush.msra.mxu0 %v1293
    %1996 = vmatpush.msra.mxu0 %v1292
    %1997 = vmatpush.msra.mxu0 %v1291
    %1998 = vmatpush.msra.mxu0 %v1290
    %1999 = vmatpush.msra.mxu0 %v1289
    %2000 = vmatpush.msra.mxu0 %v1288
    %2001 = vmatpush.msra.mxu0 %v1287
    %2002 = vmatpush.msra.mxu0 %v1286
    %2003 = vmatpush.msra.mxu0 %v1285
    %2004 = vmatpush.msra.mxu0 %v1284
    %2005 = vmatpush.msra.mxu0 %v1283
    %2006 = vmatpush.msra.mxu0 %v1282
    %2007 = vmatpush.msra.mxu0 %v1281
    %2008 = vmatpush.msra.mxu0 %v1280
    %2009 = vmatpush.msra.mxu0 %v1279
    %2010 = vmatmul.f32.gmra.mxu0 %v1436
    %v2011 = vpop.f32.mrf.mxu0
    %v2012 = vadd.f32 %v1992, %v2011
    %2013 = vdwg.mxu0
    %2014 = vmatpush.msra.mxu0 %v1310
    %2015 = vmatpush.msra.mxu0 %v1309
    %2016 = vmatpush.msra.mxu0 %v1308
    %2017 = vmatpush.msra.mxu0 %v1307
    %2018 = vmatpush.msra.mxu0 %v1306
    %2019 = vmatpush.msra.mxu0 %v1305
    %2020 = vmatpush.msra.mxu0 %v1304
    %2021 = vmatpush.msra.mxu0 %v1303
    %2022 = vmatpush.msra.mxu0 %v1302
    %2023 = vmatpush.msra.mxu0 %v1301
    %2024 = vmatpush.msra.mxu0 %v1300
    %2025 = vmatpush.msra.mxu0 %v1299
    %2026 = vmatpush.msra.mxu0 %v1298
    %2027 = vmatpush.msra.mxu0 %v1297
    %2028 = vmatpush.msra.mxu0 %v1296
    %2029 = vmatpush.msra.mxu0 %v1295
    %2030 = vmatmul.f32.gmra.mxu0 %v1437
    %v2031 = vpop.f32.mrf.mxu0
    %v2032 = vadd.f32 %v2012, %v2031
    %2033 = vdwg.mxu0
    %2034 = vmatpush.msra.mxu0 %v1326
    %2035 = vmatpush.msra.mxu0 %v1325
    %2036 = vmatpush.msra.mxu0 %v1324
    %2037 = vmatpush.msra.mxu0 %v1323
    %2038 = vmatpush.msra.mxu0 %v1322
    %2039 = vmatpush.msra.mxu0 %v1321
    %2040 = vmatpush.msra.mxu0 %v1320
    %2041 = vmatpush.msra.mxu0 %v1319
    %2042 = vmatpush.msra.mxu0 %v1318
    %2043 = vmatpush.msra.mxu0 %v1317
    %2044 = vmatpush.msra.mxu0 %v1316
    %2045 = vmatpush.msra.mxu0 %v1315
    %2046 = vmatpush.msra.mxu0 %v1314
    %2047 = vmatpush.msra.mxu0 %v1313
    %2048 = vmatpush.msra.mxu0 %v1312
    %2049 = vmatpush.msra.mxu0 %v1311
    %2050 = vmatmul.f32.gmra.mxu0 %v1438
    %v2051 = vpop.f32.mrf.mxu0
    %v2052 = vadd.f32 %v2032, %v2051
    %2053 = vdwg.mxu0
    %2054 = vmatpush.msra.mxu0 %v1342
    %2055 = vmatpush.msra.mxu0 %v1341
    %2056 = vmatpush.msra.mxu0 %v1340
    %2057 = vmatpush.msra.mxu0 %v1339
    %2058 = vmatpush.msra.mxu0 %v1338
    %2059 = vmatpush.msra.mxu0 %v1337
    %2060 = vmatpush.msra.mxu0 %v1336
    %2061 = vmatpush.msra.mxu0 %v1335
    %2062 = vmatpush.msra.mxu0 %v1334
    %2063 = vmatpush.msra.mxu0 %v1333
    %2064 = vmatpush.msra.mxu0 %v1332
    %2065 = vmatpush.msra.mxu0 %v1331
    %2066 = vmatpush.msra.mxu0 %v1330
    %2067 = vmatpush.msra.mxu0 %v1329
    %2068 = vmatpush.msra.mxu0 %v1328
    %2069 = vmatpush.msra.mxu0 %v1327
    %2070 = vmatmul.f32.gmra.mxu0 %v1439
    %v2071 = vpop.f32.mrf.mxu0
    %v2072 = vadd.f32 %v2052, %v2071
    %2073 = vdwg.mxu0
    %2074 = vmatpush.msra.mxu0 %v1358
    %2075 = vmatpush.msra.mxu0 %v1357
    %2076 = vmatpush.msra.mxu0 %v1356
    %2077 = vmatpush.msra.mxu0 %v1355
    %2078 = vmatpush.msra.mxu0 %v1354
    %2079 = vmatpush.msra.mxu0 %v1353
    %2080 = vmatpush.msra.mxu0 %v1352
    %2081 = vmatpush.msra.mxu0 %v1351
    %2082 = vmatpush.msra.mxu0 %v1350
    %2083 = vmatpush.msra.mxu0 %v1349
    %2084 = vmatpush.msra.mxu0 %v1348
    %2085 = vmatpush.msra.mxu0 %v1347
    %2086 = vmatpush.msra.mxu0 %v1346
    %2087 = vmatpush.msra.mxu0 %v1345
    %2088 = vmatpush.msra.mxu0 %v1344
    %2089 = vmatpush.msra.mxu0 %v1343
    %2090 = vmatmul.f32.gmra.mxu0 %v1440
    %v2091 = vpop.f32.mrf.mxu0
    %v2092 = vadd.f32 %v2072, %v2091
    %2093 = vdwg.mxu0
    %2094 = vmatpush.msra.mxu0 %v1374
    %2095 = vmatpush.msra.mxu0 %v1373
    %2096 = vmatpush.msra.mxu0 %v1372
    %2097 = vmatpush.msra.mxu0 %v1371
    %2098 = vmatpush.msra.mxu0 %v1370
    %2099 = vmatpush.msra.mxu0 %v1369
    %2100 = vmatpush.msra.mxu0 %v1368
    %2101 = vmatpush.msra.mxu0 %v1367
    %2102 = vmatpush.msra.mxu0 %v1366
    %2103 = vmatpush.msra.mxu0 %v1365
    %2104 = vmatpush.msra.mxu0 %v1364
    %2105 = vmatpush.msra.mxu0 %v1363
    %2106 = vmatpush.msra.mxu0 %v1362
    %2107 = vmatpush.msra.mxu0 %v1361
    %2108 = vmatpush.msra.mxu0 %v1360
    %2109 = vmatpush.msra.mxu0 %v1359
    %2110 = vmatmul.f32.gmra.mxu0 %v1441
    %v2111 = vpop.f32.mrf.mxu0
    %v2112 = vadd.f32 %v2092, %v2111
    %2113 = vdwg.mxu0
    %vm2114 = vcmask 257024
    %2115 = vst.msk [vmem:[%s8] sm:$0xf] %vm2114, %v333
    %2117 = vrot.lane.b32.xlu0 %v2112, 32
    %v2118 = vpop.permute.xlu0 %2117
    %vm2120 = vcmask 519424
    %2121 = vst.msk [vmem:[%s8] sm:$0xf] %vm2120, %v2118
    // Predicated region
    $region38: #{disen_vae_forward.1} parent=1 // pred_check
      _
    $region39: #{disen_vae_forward.1} parent=1 // pred_check_branch
      %2123 = sbr.rel (0) target = $region41
    $region40: #{disen_vae_forward.1} parent=1 // pred_region
      _
    $region41: #{disen_vae_forward.1} parent=1 // pred_fallthru
      _
    // Predicated region
    $region42: #{disen_vae_forward.1} parent=1 // pred_check
      _
    $region43: #{disen_vae_forward.1} parent=1 // pred_check_branch
      %2125 = sbr.rel (0) target = $region45
    $region44: #{disen_vae_forward.1} parent=1 // pred_region
      _
    $region45: #{disen_vae_forward.1} parent=1 // pred_fallthru
      _
    %2126 = vsyncpa [#allocation3], 1

</llo_original>
